<compile_context>
chip_gen: v5e
topology: v5e:2x2
jax: 0.10.0
libtpu: 0.0.40
codegen_flags: <defaults>
</compile_context>

<pallas_src>
import jax
import jax.numpy as jnp
from jax import lax
from jax.experimental import pallas as pl
from jax.experimental.pallas import tpu as pltpu


# ----------------------------------------------------------------------------
# Kernels
# ----------------------------------------------------------------------------
def _conv_pool_relu_kernel(p_ref, w_ref, b_ref, o_ref):
    """Fused conv(as im2col matmul) + bias + 2x2 maxpool + relu, transposed layout.

    p_ref: (4, K, TN) bf16 patches; axis 0 = position inside the 2x2 pool
           window, K = Cin*kh*kw, TN = lane tile over (batch, pooled i, pooled j).
    w_ref: (C, K) bf16 reshaped conv weight.
    b_ref: (C, 1) f32 bias (lane-broadcast in kernel).
    o_ref: (C, TN) f32 = relu(maxpool(conv(x)) + bias)  (bias/relu commute w/ max)
    """
    w = w_ref[...]
    y0 = jnp.dot(w, p_ref[0], preferred_element_type=jnp.float32)
    y1 = jnp.dot(w, p_ref[1], preferred_element_type=jnp.float32)
    y2 = jnp.dot(w, p_ref[2], preferred_element_type=jnp.float32)
    y3 = jnp.dot(w, p_ref[3], preferred_element_type=jnp.float32)
    m = jnp.maximum(jnp.maximum(y0, y1), jnp.maximum(y2, y3))        # (C, TN)
    o_ref[...] = jnp.maximum(m + b_ref[...], 0.0)


def _mlp_logsoftmax_kernel(h_ref, w1_ref, b1_ref, w2_ref, b2_ref, o_ref):
    """Fused fc1 + relu + fc2 + log_softmax (dropout is identity at inference).

    Weights arrive bf16 (halved HBM read) and are upcast in-kernel; all math f32.
    """
    h = h_ref[...]                                                    # (TB, 320) f32
    w1 = w1_ref[...].astype(jnp.float32)                              # (320, 50)
    w2 = w2_ref[...].astype(jnp.float32)                              # (50, 10)
    z1 = jnp.dot(h, w1, preferred_element_type=jnp.float32) + b1_ref[...]
    z1 = jnp.maximum(z1, 0.0)                                         # (TB, 50)
    z2 = jnp.dot(z1, w2, preferred_element_type=jnp.float32) + b2_ref[...]
    m = jnp.max(z2, axis=1, keepdims=True)
    lse = jnp.log(jnp.sum(jnp.exp(z2 - m), axis=1, keepdims=True)) + m
    o_ref[...] = z2 - lse                                             # (TB, 10)


# ----------------------------------------------------------------------------
# Tiling helpers
# ----------------------------------------------------------------------------
def _lane_tiling(n, max_tile):
    """Tile along a lane (last-dim) axis: full extent if small, else a
    multiple-of-128 tile with n padded up to a tile multiple."""
    if n <= max_tile:
        return n, n
    tile = max_tile                                   # multiple of 128
    return tile, ((n + tile - 1) // tile) * tile


def _row_tiling(n, max_tile):
    """Tile along a sublane (second-to-last) axis: full extent if small, else a
    multiple-of-8 tile with n padded up to a tile multiple."""
    if n <= max_tile:
        return n, n
    tile = max_tile                                   # multiple of 8
    return tile, ((n + tile - 1) // tile) * tile


_COMPILER_PARAMS = pltpu.CompilerParams(
    dimension_semantics=("parallel",),
    vmem_limit_bytes=32 * 1024 * 1024,
)


# ----------------------------------------------------------------------------
# Wrapper-side layout plumbing (pure data movement, fused by XLA)
# ----------------------------------------------------------------------------
def _extract_patches_T(x, kh, kw):
    """x: (B, H, W, C) -> (4, C*kh*kw, B*PH*PW) pool-major, transposed patches.

    axis 0: position (a, b) inside the 2x2 pool window (q = 2a + b)
    axis 1: patch column k = c*kh*kw + di*kw + dj  (matches torch OIHW flatten)
    axis 2: n = ((batch*PH + ip)*PW + jp)          (lane axis of the kernel)
    """
    b, h, w, c = x.shape
    oh, ow = h - kh + 1, w - kw + 1
    ph, pw = oh // 2, ow // 2
    cols = []
    for di in range(kh):
        for dj in range(kw):
            cols.append(x[:, di:di + oh, dj:dj + ow, :])      # (B, OH, OW, C)
    p = jnp.stack(cols, axis=0)                               # (25, B, OH, OW, C)
    p = p.reshape(kh * kw, b, ph, 2, pw, 2, c)
    p = jnp.transpose(p, (3, 5, 6, 0, 1, 2, 4))               # (2,2,C,25,B,PH,PW)
    return p.reshape(4, c * kh * kw, b * ph * pw)


def _conv_pool_relu(p, w, bias, *, max_tile):
    """p: (4, K, N) bf16, w: (C, K) bf16, bias: (C, 1) f32 -> (C, N) f32."""
    _, k, n = p.shape
    c = w.shape[0]
    tn, n_pad = _lane_tiling(n, max_tile)
    if n_pad != n:
        p = jnp.pad(p, ((0, 0), (0, 0), (0, n_pad - n)))
    out = pl.pallas_call(
        _conv_pool_relu_kernel,
        out_shape=jax.ShapeDtypeStruct((c, n_pad), jnp.float32),
        grid=(n_pad // tn,),
        in_specs=[
            pl.BlockSpec((4, k, tn), lambda i: (0, 0, i)),
            pl.BlockSpec((c, k), lambda i: (0, 0)),     # resident across grid steps
            pl.BlockSpec((c, 1), lambda i: (0, 0)),
        ],
        out_specs=pl.BlockSpec((c, tn), lambda i: (0, i)),
        compiler_params=_COMPILER_PARAMS,
    )(p, w, bias)
    return out[:, :n] if n_pad != n else out


def _mlp_logsoftmax(h, w1, b1, w2, b2, *, max_rows=512):
    """h: (B, 320) f32, w1/w2 bf16, b1/b2 f32 -> (B, 10) f32 log-probs."""
    b, d = h.shape
    n_out = w2.shape[1]
    tb, b_pad = _row_tiling(b, max_rows)
    if b_pad != b:
        h = jnp.pad(h, ((0, b_pad - b), (0, 0)))
    out = pl.pallas_call(
        _mlp_logsoftmax_kernel,
        out_shape=jax.ShapeDtypeStruct((b_pad, n_out), jnp.float32),
        grid=(b_pad // tb,),
        in_specs=[
            pl.BlockSpec((tb, d), lambda i: (i, 0)),
            pl.BlockSpec(w1.shape, lambda i: (0, 0)),
            pl.BlockSpec(b1.shape, lambda i: (0, 0)),
            pl.BlockSpec(w2.shape, lambda i: (0, 0)),
            pl.BlockSpec(b2.shape, lambda i: (0, 0)),
        ],
        out_specs=pl.BlockSpec((tb, n_out), lambda i: (i, 0)),
        compiler_params=_COMPILER_PARAMS,
    )(h, w1, b1, w2, b2)
    return out[:b] if b_pad != b else out


def my_model_forward(x, params):
    """JAX/Pallas equivalent of MyModel.forward (inference / eval mode).

    x: (B, 1, 28, 28) float32.  Returns (B, 10) log-probabilities.
    """
    w_c1, b_c1, w_c2, b_c2, w_f1, b_f1, w_f2, b_f2 = params
    bsz = x.shape[0]
    c1, c2 = w_c1.shape[0], w_c2.shape[0]

    # --- conv1 block: conv(1->10,5x5) + maxpool2 + relu ---
    x_hw = jnp.transpose(x, (0, 2, 3, 1)).astype(jnp.bfloat16)        # (B,28,28,1)
    ph1 = (x.shape[2] - 4) // 2                                       # 12
    pw1 = (x.shape[3] - 4) // 2                                       # 12
    p1 = _extract_patches_T(x_hw, 5, 5)                               # (4, 25, B*144) bf16
    w1r = w_c1.reshape(c1, -1).astype(jnp.bfloat16)                   # (10, 25)
    h1_t = _conv_pool_relu(p1, w1r, b_c1.reshape(c1, 1), max_tile=2048)   # (10, B*144) f32
    h1 = h1_t.reshape(c1, bsz, ph1, pw1).transpose(1, 2, 3, 0)        # (B,12,12,10)

    # --- conv2 block: conv(10->20,5x5) + Dropout2d(identity) + maxpool2 + relu ---
    ph2, pw2 = (ph1 - 4) // 2, (pw1 - 4) // 2                         # 4, 4
    p2 = _extract_patches_T(h1.astype(jnp.bfloat16), 5, 5)            # (4, 250, B*16) bf16
    w2r = w_c2.reshape(c2, -1).astype(jnp.bfloat16)                   # (20, 250)
    h2_t = _conv_pool_relu(p2, w2r, b_c2.reshape(c2, 1), max_tile=1024)   # (20, B*16) f32

    # torch view(-1, 320) flattens (C=20, H=4, W=4) channel-major:
    h2 = h2_t.reshape(c2, bsz, ph2, pw2).transpose(1, 0, 2, 3).reshape(bsz, c2 * ph2 * pw2)

    # --- fused FC head: fc1 + relu + dropout(identity) + fc2 + log_softmax ---
    return _mlp_logsoftmax(
        h2,
        w_f1.T.astype(jnp.bfloat16), b_f1.reshape(1, -1),
        w_f2.T.astype(jnp.bfloat16), b_f2.reshape(1, -1),
    )


# ----------------------------------------------------------------------------
# Pure-JAX reference (for correctness check)
# ----------------------------------------------------------------------------
def _max_pool2(y):                                   # (B, C, H, W) -> (B, C, H/2, W/2)
    b, c, h, w = y.shape
    return y.reshape(b, c, h // 2, 2, w // 2, 2).max(axis=(3, 5))


def _reference(x, params):
    w_c1, b_c1, w_c2, b_c2, w_f1, b_f1, w_f2, b_f2 = params
    dn = ('NCHW', 'OIHW', 'NCHW')
    hp = lax.Precision.HIGHEST
    y = lax.conv_general_dilated(x, w_c1, (1, 1), 'VALID', dimension_numbers=dn,
                                 precision=hp) + b_c1[None, :, None, None]
    y = jnp.maximum(_max_pool2(y), 0.0)
    y = lax.conv_general_dilated(y, w_c2, (1, 1), 'VALID', dimension_numbers=dn,
                                 precision=hp) + b_c2[None, :, None, None]
    y = jnp.maximum(_max_pool2(y), 0.0)
    y = y.reshape(y.shape[0], -1)
    y = jnp.maximum(jnp.dot(y, w_f1.T, precision=hp) + b_f1, 0.0)
    y = jnp.dot(y, w_f2.T, precision=hp) + b_f2
    return jax.nn.log_softmax(y, axis=1)


if __name__ == "__main__":
    B = 2
    key = jax.random.PRNGKey(0)
    ks = jax.random.split(key, 9)

    x = jax.random.normal(ks[0], (B, 1, 28, 28), dtype=jnp.float32)
    w_c1 = 0.1 * jax.random.normal(ks[1], (10, 1, 5, 5), dtype=jnp.float32)
    b_c1 = 0.1 * jax.random.normal(ks[2], (10,), dtype=jnp.float32)
    w_c2 = 0.1 * jax.random.normal(ks[3], (20, 10, 5, 5), dtype=jnp.float32)
    b_c2 = 0.1 * jax.random.normal(ks[4], (20,), dtype=jnp.float32)
    w_f1 = 0.1 * jax.random.normal(ks[5], (50, 320), dtype=jnp.float32)
    b_f1 = 0.1 * jax.random.normal(ks[6], (50,), dtype=jnp.float32)
    w_f2 = 0.1 * jax.random.normal(ks[7], (10, 50), dtype=jnp.float32)
    b_f2 = 0.1 * jax.random.normal(ks[8], (10,), dtype=jnp.float32)
    params = (w_c1, b_c1, w_c2, b_c2, w_f1, b_f1, w_f2, b_f2)

    out = jax.jit(my_model_forward)(x, params)
    jax.block_until_ready(out)

    ref = _reference(x, params)
    assert out.shape == (B, 10)
    max_err = float(jnp.max(jnp.abs(out - ref)))
    # bf16 matmul operands -> bf16-appropriate tolerance (accumulation is f32)
    assert jnp.allclose(out, ref, atol=3e-2, rtol=3e-2), max_err
    # rows of log_softmax must exponentiate to a probability distribution
    assert jnp.allclose(jnp.sum(jnp.exp(out), axis=1), 1.0, atol=1e-3)

    print("KERNEL_OK")
</pallas_src>

<mosaic_0001>
module attributes {stable_mosaic.version = 11 : i64} {
  func.func @_conv_pool_relu_kernel(%arg0: i32, %arg1: memref<4x25x288xbf16, #tpu.memory_space<vmem>>, %arg2: memref<10x25xbf16, #tpu.memory_space<vmem>>, %arg3: memref<10x1xf32, #tpu.memory_space<vmem>>, %arg4: memref<10x288xf32, #tpu.memory_space<vmem>>) attributes {dimension_semantics = [#tpu.dimension_semantics<parallel>], iteration_bounds = array<i64: 1>, scalar_prefetch = 0 : i64, scratch_operands = 0 : i64, tpu.core_type = #tpu.core_type<tc>, window_params = [{transform_indices = @transform_0, window_bounds = array<i64: 4, 25, 288>}, {pipeline_mode = #tpu.pipeline_mode<synchronous>, transform_indices = @transform_1, window_bounds = array<i64: 10, 25>}, {pipeline_mode = #tpu.pipeline_mode<synchronous>, transform_indices = @transform_2, window_bounds = array<i64: 10, 1>}, {transform_indices = @transform_3, window_bounds = array<i64: 10, 288>}]} {
    %c0 = arith.constant 0 : index
    %c0_0 = arith.constant 0 : index
    %0 = vector.load %arg2[%c0, %c0_0] : memref<10x25xbf16, #tpu.memory_space<vmem>>, vector<10x25xbf16>
    %c0_1 = arith.constant 0 : index
    %c0_2 = arith.constant 0 : index
    %c0_3 = arith.constant 0 : index
    %1 = vector.load %arg1[%c0_1, %c0_2, %c0_3] : memref<4x25x288xbf16, #tpu.memory_space<vmem>>, vector<1x25x288xbf16>
    %2 = vector.shape_cast %1 : vector<1x25x288xbf16> to vector<25x288xbf16>
    %cst = arith.constant dense<0.000000e+00> : vector<10x288xf32>
    %3 = tpu.matmul %0, %2, %cst {dimension_numbers = #tpu.dot_dimension_numbers<[1], [0], [0], [1], [0, 0, 1, 1], [], []>} : vector<10x25xbf16>, vector<25x288xbf16>, vector<10x288xf32> -> vector<10x288xf32>
    %c1 = arith.constant 1 : index
    %c0_4 = arith.constant 0 : index
    %c0_5 = arith.constant 0 : index
    %4 = vector.load %arg1[%c1, %c0_4, %c0_5] : memref<4x25x288xbf16, #tpu.memory_space<vmem>>, vector<1x25x288xbf16>
    %5 = vector.shape_cast %4 : vector<1x25x288xbf16> to vector<25x288xbf16>
    %cst_6 = arith.constant dense<0.000000e+00> : vector<10x288xf32>
    %6 = tpu.matmul %0, %5, %cst_6 {dimension_numbers = #tpu.dot_dimension_numbers<[1], [0], [0], [1], [0, 0, 1, 1], [], []>} : vector<10x25xbf16>, vector<25x288xbf16>, vector<10x288xf32> -> vector<10x288xf32>
    %c2 = arith.constant 2 : index
    %c0_7 = arith.constant 0 : index
    %c0_8 = arith.constant 0 : index
    %7 = vector.load %arg1[%c2, %c0_7, %c0_8] : memref<4x25x288xbf16, #tpu.memory_space<vmem>>, vector<1x25x288xbf16>
    %8 = vector.shape_cast %7 : vector<1x25x288xbf16> to vector<25x288xbf16>
    %cst_9 = arith.constant dense<0.000000e+00> : vector<10x288xf32>
    %9 = tpu.matmul %0, %8, %cst_9 {dimension_numbers = #tpu.dot_dimension_numbers<[1], [0], [0], [1], [0, 0, 1, 1], [], []>} : vector<10x25xbf16>, vector<25x288xbf16>, vector<10x288xf32> -> vector<10x288xf32>
    %c3 = arith.constant 3 : index
    %c0_10 = arith.constant 0 : index
    %c0_11 = arith.constant 0 : index
    %10 = vector.load %arg1[%c3, %c0_10, %c0_11] : memref<4x25x288xbf16, #tpu.memory_space<vmem>>, vector<1x25x288xbf16>
    %11 = vector.shape_cast %10 : vector<1x25x288xbf16> to vector<25x288xbf16>
    %cst_12 = arith.constant dense<0.000000e+00> : vector<10x288xf32>
    %12 = tpu.matmul %0, %11, %cst_12 {dimension_numbers = #tpu.dot_dimension_numbers<[1], [0], [0], [1], [0, 0, 1, 1], [], []>} : vector<10x25xbf16>, vector<25x288xbf16>, vector<10x288xf32> -> vector<10x288xf32>
    %13 = arith.maximumf %3, %6 : vector<10x288xf32>
    %14 = arith.maximumf %9, %12 : vector<10x288xf32>
    %15 = arith.maximumf %13, %14 : vector<10x288xf32>
    %c0_13 = arith.constant 0 : index
    %c0_14 = arith.constant 0 : index
    %16 = vector.load %arg3[%c0_13, %c0_14] : memref<10x1xf32, #tpu.memory_space<vmem>>, vector<10x1xf32>
    %17 = vector.broadcast %16 : vector<10x1xf32> to vector<10x288xf32>
    %18 = arith.addf %15, %17 : vector<10x288xf32>
    %cst_15 = arith.constant 0.000000e+00 : f32
    %19 = vector.broadcast %cst_15 : f32 to vector<10x288xf32>
    %20 = arith.maximumf %18, %19 : vector<10x288xf32>
    %c0_16 = arith.constant 0 : index
    %c0_17 = arith.constant 0 : index
    %21 = vector.load %arg4[%c0_16, %c0_17] : memref<10x288xf32, #tpu.memory_space<vmem>>, vector<10x288xf32>
    tpu.vector_store %arg4[%c0_16, %c0_17], %20 {strides = array<i32>} : memref<10x288xf32, #tpu.memory_space<vmem>>, vector<10x288xf32>,
    return
  }
  func.func @transform_0(%arg0: i32) -> (i32, i32, i32) {
    %c0_i32 = arith.constant 0 : i32
    %c0_i32_0 = arith.constant 0 : i32
    %c0_i32_1 = arith.constant 0 : i32
    return %c0_i32, %c0_i32_0, %arg0 : i32, i32, i32
  }
  func.func @transform_1(%arg0: i32) -> (i32, i32) {
    %c0_i32 = arith.constant 0 : i32
    %c0_i32_0 = arith.constant 0 : i32
    %c0_i32_1 = arith.constant 0 : i32
    return %c0_i32, %c0_i32_0 : i32, i32
  }
  func.func @transform_2(%arg0: i32) -> (i32, i32) {
    %c0_i32 = arith.constant 0 : i32
    %c0_i32_0 = arith.constant 0 : i32
    %c0_i32_1 = arith.constant 0 : i32
    return %c0_i32, %c0_i32_0 : i32, i32
  }
  func.func @transform_3(%arg0: i32) -> (i32, i32) {
    %c0_i32 = arith.constant 0 : i32
    %c0_i32_0 = arith.constant 0 : i32
    return %c0_i32, %arg0 : i32, i32
  }
}

module attributes {stable_mosaic.version = 11 : i64} {
  func.func @_conv_pool_relu_kernel(%arg0: i32, %arg1: memref<4x250x32xbf16, #tpu.memory_space<vmem>>, %arg2: memref<20x250xbf16, #tpu.memory_space<vmem>>, %arg3: memref<20x1xf32, #tpu.memory_space<vmem>>, %arg4: memref<20x32xf32, #tpu.memory_space<vmem>>) attributes {dimension_semantics = [#tpu.dimension_semantics<parallel>], iteration_bounds = array<i64: 1>, scalar_prefetch = 0 : i64, scratch_operands = 0 : i64, tpu.core_type = #tpu.core_type<tc>, window_params = [{transform_indices = @transform_0, window_bounds = array<i64: 4, 250, 32>}, {pipeline_mode = #tpu.pipeline_mode<synchronous>, transform_indices = @transform_1, window_bounds = array<i64: 20, 250>}, {pipeline_mode = #tpu.pipeline_mode<synchronous>, transform_indices = @transform_2, window_bounds = array<i64: 20, 1>}, {transform_indices = @transform_3, window_bounds = array<i64: 20, 32>}]} {
    %c0 = arith.constant 0 : index
    %c0_0 = arith.constant 0 : index
    %0 = vector.load %arg2[%c0, %c0_0] : memref<20x250xbf16, #tpu.memory_space<vmem>>, vector<20x250xbf16>
    %c0_1 = arith.constant 0 : index
    %c0_2 = arith.constant 0 : index
    %c0_3 = arith.constant 0 : index
    %1 = vector.load %arg1[%c0_1, %c0_2, %c0_3] : memref<4x250x32xbf16, #tpu.memory_space<vmem>>, vector<1x250x32xbf16>
    %2 = vector.shape_cast %1 : vector<1x250x32xbf16> to vector<250x32xbf16>
    %cst = arith.constant dense<0.000000e+00> : vector<20x32xf32>
    %3 = tpu.matmul %0, %2, %cst {dimension_numbers = #tpu.dot_dimension_numbers<[1], [0], [0], [1], [0, 0, 1, 1], [], []>} : vector<20x250xbf16>, vector<250x32xbf16>, vector<20x32xf32> -> vector<20x32xf32>
    %c1 = arith.constant 1 : index
    %c0_4 = arith.constant 0 : index
    %c0_5 = arith.constant 0 : index
    %4 = vector.load %arg1[%c1, %c0_4, %c0_5] : memref<4x250x32xbf16, #tpu.memory_space<vmem>>, vector<1x250x32xbf16>
    %5 = vector.shape_cast %4 : vector<1x250x32xbf16> to vector<250x32xbf16>
    %cst_6 = arith.constant dense<0.000000e+00> : vector<20x32xf32>
    %6 = tpu.matmul %0, %5, %cst_6 {dimension_numbers = #tpu.dot_dimension_numbers<[1], [0], [0], [1], [0, 0, 1, 1], [], []>} : vector<20x250xbf16>, vector<250x32xbf16>, vector<20x32xf32> -> vector<20x32xf32>
    %c2 = arith.constant 2 : index
    %c0_7 = arith.constant 0 : index
    %c0_8 = arith.constant 0 : index
    %7 = vector.load %arg1[%c2, %c0_7, %c0_8] : memref<4x250x32xbf16, #tpu.memory_space<vmem>>, vector<1x250x32xbf16>
    %8 = vector.shape_cast %7 : vector<1x250x32xbf16> to vector<250x32xbf16>
    %cst_9 = arith.constant dense<0.000000e+00> : vector<20x32xf32>
    %9 = tpu.matmul %0, %8, %cst_9 {dimension_numbers = #tpu.dot_dimension_numbers<[1], [0], [0], [1], [0, 0, 1, 1], [], []>} : vector<20x250xbf16>, vector<250x32xbf16>, vector<20x32xf32> -> vector<20x32xf32>
    %c3 = arith.constant 3 : index
    %c0_10 = arith.constant 0 : index
    %c0_11 = arith.constant 0 : index
    %10 = vector.load %arg1[%c3, %c0_10, %c0_11] : memref<4x250x32xbf16, #tpu.memory_space<vmem>>, vector<1x250x32xbf16>
    %11 = vector.shape_cast %10 : vector<1x250x32xbf16> to vector<250x32xbf16>
    %cst_12 = arith.constant dense<0.000000e+00> : vector<20x32xf32>
    %12 = tpu.matmul %0, %11, %cst_12 {dimension_numbers = #tpu.dot_dimension_numbers<[1], [0], [0], [1], [0, 0, 1, 1], [], []>} : vector<20x250xbf16>, vector<250x32xbf16>, vector<20x32xf32> -> vector<20x32xf32>
    %13 = arith.maximumf %3, %6 : vector<20x32xf32>
    %14 = arith.maximumf %9, %12 : vector<20x32xf32>
    %15 = arith.maximumf %13, %14 : vector<20x32xf32>
    %c0_13 = arith.constant 0 : index
    %c0_14 = arith.constant 0 : index
    %16 = vector.load %arg3[%c0_13, %c0_14] : memref<20x1xf32, #tpu.memory_space<vmem>>, vector<20x1xf32>
    %17 = vector.broadcast %16 : vector<20x1xf32> to vector<20x32xf32>
    %18 = arith.addf %15, %17 : vector<20x32xf32>
    %cst_15 = arith.constant 0.000000e+00 : f32
    %19 = vector.broadcast %cst_15 : f32 to vector<20x32xf32>
    %20 = arith.maximumf %18, %19 : vector<20x32xf32>
    %c0_16 = arith.constant 0 : index
    %c0_17 = arith.constant 0 : index
    %21 = vector.load %arg4[%c0_16, %c0_17] : memref<20x32xf32, #tpu.memory_space<vmem>>, vector<20x32xf32>
    tpu.vector_store %arg4[%c0_16, %c0_17], %20 {strides = array<i32>} : memref<20x32xf32, #tpu.memory_space<vmem>>, vector<20x32xf32>,
    return
  }
  func.func @transform_0(%arg0: i32) -> (i32, i32, i32) {
    %c0_i32 = arith.constant 0 : i32
    %c0_i32_0 = arith.constant 0 : i32
    %c0_i32_1 = arith.constant 0 : i32
    return %c0_i32, %c0_i32_0, %arg0 : i32, i32, i32
  }
  func.func @transform_1(%arg0: i32) -> (i32, i32) {
    %c0_i32 = arith.constant 0 : i32
    %c0_i32_0 = arith.constant 0 : i32
    %c0_i32_1 = arith.constant 0 : i32
    return %c0_i32, %c0_i32_0 : i32, i32
  }
  func.func @transform_2(%arg0: i32) -> (i32, i32) {
    %c0_i32 = arith.constant 0 : i32
    %c0_i32_0 = arith.constant 0 : i32
    %c0_i32_1 = arith.constant 0 : i32
    return %c0_i32, %c0_i32_0 : i32, i32
  }
  func.func @transform_3(%arg0: i32) -> (i32, i32) {
    %c0_i32 = arith.constant 0 : i32
    %c0_i32_0 = arith.constant 0 : i32
    return %c0_i32, %arg0 : i32, i32
  }
}

module attributes {stable_mosaic.version = 11 : i64} {
  func.func @_mlp_logsoftmax_kernel(%arg0: i32, %arg1: memref<2x320xf32, #tpu.memory_space<vmem>>, %arg2: memref<320x50xbf16, #tpu.memory_space<vmem>>, %arg3: memref<1x50xf32, #tpu.memory_space<vmem>>, %arg4: memref<50x10xbf16, #tpu.memory_space<vmem>>, %arg5: memref<1x10xf32, #tpu.memory_space<vmem>>, %arg6: memref<2x10xf32, #tpu.memory_space<vmem>>) attributes {dimension_semantics = [#tpu.dimension_semantics<parallel>], iteration_bounds = array<i64: 1>, scalar_prefetch = 0 : i64, scratch_operands = 0 : i64, tpu.core_type = #tpu.core_type<tc>, window_params = [{transform_indices = @transform_0, window_bounds = array<i64: 2, 320>}, {pipeline_mode = #tpu.pipeline_mode<synchronous>, transform_indices = @transform_1, window_bounds = array<i64: 320, 50>}, {pipeline_mode = #tpu.pipeline_mode<synchronous>, transform_indices = @transform_2, window_bounds = array<i64: 1, 50>}, {pipeline_mode = #tpu.pipeline_mode<synchronous>, transform_indices = @transform_3, window_bounds = array<i64: 50, 10>}, {pipeline_mode = #tpu.pipeline_mode<synchronous>, transform_indices = @transform_4, window_bounds = array<i64: 1, 10>}, {transform_indices = @transform_5, window_bounds = array<i64: 2, 10>}]} {
    %c0 = arith.constant 0 : index
    %c0_0 = arith.constant 0 : index
    %0 = vector.load %arg1[%c0, %c0_0] : memref<2x320xf32, #tpu.memory_space<vmem>>, vector<2x320xf32>
    %c0_1 = arith.constant 0 : index
    %c0_2 = arith.constant 0 : index
    %1 = vector.load %arg2[%c0_1, %c0_2] : memref<320x50xbf16, #tpu.memory_space<vmem>>, vector<320x50xbf16>
    %2 = arith.extf %1 : vector<320x50xbf16> to vector<320x50xf32>
    %c0_3 = arith.constant 0 : index
    %c0_4 = arith.constant 0 : index
    %3 = vector.load %arg4[%c0_3, %c0_4] : memref<50x10xbf16, #tpu.memory_space<vmem>>, vector<50x10xbf16>
    %4 = arith.extf %3 : vector<50x10xbf16> to vector<50x10xf32>
    %cst = arith.constant dense<0.000000e+00> : vector<2x50xf32>
    %5 = tpu.matmul %0, %2, %cst {dimension_numbers = #tpu.dot_dimension_numbers<[1], [0], [0], [1], [0, 0, 1, 1], [], []>} : vector<2x320xf32>, vector<320x50xf32>, vector<2x50xf32> -> vector<2x50xf32>
    %c0_5 = arith.constant 0 : index
    %c0_6 = arith.constant 0 : index
    %6 = vector.load %arg3[%c0_5, %c0_6] : memref<1x50xf32, #tpu.memory_space<vmem>>, vector<1x50xf32>
    %7 = vector.broadcast %6 : vector<1x50xf32> to vector<2x50xf32>
    %8 = arith.addf %5, %7 : vector<2x50xf32>
    %cst_7 = arith.constant 0.000000e+00 : f32
    %9 = vector.broadcast %cst_7 : f32 to vector<2x50xf32>
    %10 = arith.maximumf %8, %9 : vector<2x50xf32>
    %cst_8 = arith.constant dense<0.000000e+00> : vector<2x10xf32>
    %11 = tpu.matmul %10, %4, %cst_8 {dimension_numbers = #tpu.dot_dimension_numbers<[1], [0], [0], [1], [0, 0, 1, 1], [], []>} : vector<2x50xf32>, vector<50x10xf32>, vector<2x10xf32> -> vector<2x10xf32>
    %c0_9 = arith.constant 0 : index
    %c0_10 = arith.constant 0 : index
    %12 = vector.load %arg5[%c0_9, %c0_10] : memref<1x10xf32, #tpu.memory_space<vmem>>, vector<1x10xf32>
    %13 = vector.broadcast %12 : vector<1x10xf32> to vector<2x10xf32>
    %14 = arith.addf %11, %13 : vector<2x10xf32>
    %cst_11 = arith.constant dense<0xFF800000> : vector<2xf32>
    %15 = vector.multi_reduction <maximumf>, %14, %cst_11 [1] : vector<2x10xf32> to vector<2xf32>
    %16 = vector.shape_cast %15 : vector<2xf32> to vector<2x1xf32>
    %17 = vector.broadcast %16 : vector<2x1xf32> to vector<2x10xf32>
    %18 = arith.subf %14, %17 : vector<2x10xf32>
    %19 = math.exp %18 : vector<2x10xf32>
    %cst_12 = arith.constant dense<0.000000e+00> : vector<2xf32>
    %20 = vector.multi_reduction <add>, %19, %cst_12 [1] : vector<2x10xf32> to vector<2xf32>
    %21 = vector.shape_cast %20 : vector<2xf32> to vector<2x1xf32>
    %22 = math.log %21 : vector<2x1xf32>
    %23 = arith.addf %22, %16 : vector<2x1xf32>
    %24 = vector.broadcast %23 : vector<2x1xf32> to vector<2x10xf32>
    %25 = arith.subf %14, %24 : vector<2x10xf32>
    %c0_13 = arith.constant 0 : index
    %c0_14 = arith.constant 0 : index
    %26 = vector.load %arg6[%c0_13, %c0_14] : memref<2x10xf32, #tpu.memory_space<vmem>>, vector<2x10xf32>
    tpu.vector_store %arg6[%c0_13, %c0_14], %25 {strides = array<i32>} : memref<2x10xf32, #tpu.memory_space<vmem>>, vector<2x10xf32>,
    return
  }
  func.func @transform_0(%arg0: i32) -> (i32, i32) {
    %c0_i32 = arith.constant 0 : i32
    %c0_i32_0 = arith.constant 0 : i32
    return %arg0, %c0_i32 : i32, i32
  }
  func.func @transform_1(%arg0: i32) -> (i32, i32) {
    %c0_i32 = arith.constant 0 : i32
    %c0_i32_0 = arith.constant 0 : i32
    %c0_i32_1 = arith.constant 0 : i32
    return %c0_i32, %c0_i32_0 : i32, i32
  }
  func.func @transform_2(%arg0: i32) -> (i32, i32) {
    %c0_i32 = arith.constant 0 : i32
    %c0_i32_0 = arith.constant 0 : i32
    %c0_i32_1 = arith.constant 0 : i32
    return %c0_i32, %c0_i32_0 : i32, i32
  }
  func.func @transform_3(%arg0: i32) -> (i32, i32) {
    %c0_i32 = arith.constant 0 : i32
    %c0_i32_0 = arith.constant 0 : i32
    %c0_i32_1 = arith.constant 0 : i32
    return %c0_i32, %c0_i32_0 : i32, i32
  }
  func.func @transform_4(%arg0: i32) -> (i32, i32) {
    %c0_i32 = arith.constant 0 : i32
    %c0_i32_0 = arith.constant 0 : i32
    %c0_i32_1 = arith.constant 0 : i32
    return %c0_i32, %c0_i32_0 : i32, i32
  }
  func.func @transform_5(%arg0: i32) -> (i32, i32) {
    %c0_i32 = arith.constant 0 : i32
    %c0_i32_0 = arith.constant 0 : i32
    return %arg0, %c0_i32 : i32, i32
  }
}

</mosaic_0001>

<llo_original>
// kernel: my_model_forward.3
$region0: #{my_model_forward.3}
  #allocation0 [shape = 'u32[]', space=smem, size = 0x4, offset = 0x4, fixed_abs, tag = 'smem constant byte address 0x4 - core index']
  #allocation1 [shape = 'u32[72,128]{1,0:T(1,128)}', space=vmem, size = 0x9000, scoped, tag = 'internal scratch']
  %s0 = inlined_call_operand.vmem [shape: bf16[4,25,288], index: 0, kind: input, shape index: {}]
  %s1 = inlined_call_operand.vmem [shape: bf16[10,25], index: 1, kind: input, shape index: {}]
  %s2 = inlined_call_operand.vmem [shape: f32[10,1], index: 2, kind: input, shape index: {}]
  %s3 = inlined_call_operand.vmem [shape: f32[10,288], index: 3, kind: output, shape index: {}]
  %s4 = sld [smem:[#allocation0]]
  $region22: #{my_model_forward.3} parent=0
    _
  %s6 = ssub.s32 1, %s4
  %s7 = scalar_select 0, %s6, %s4
  // Predicated region
  $region2: #{my_model_forward.3} parent=0 // pred_check
    _
  $region3: #{my_model_forward.3} parent=0 // pred_check_branch
    %9 = sbr.rel (0) target = $region5
  $region4: #{my_model_forward.3} parent=0 // pred_region
    _
  $region5: #{my_model_forward.3} parent=0 // pred_fallthru
    _
  // Predicated region
  $region6: #{my_model_forward.3} parent=0 // pred_check
    _
  $region7: #{my_model_forward.3} parent=0 // pred_check_branch
    %11 = sbr.rel (0) target = $region9
  $region8: #{my_model_forward.3} parent=0 // pred_region
    _
  $region9: #{my_model_forward.3} parent=0 // pred_fallthru
    _
  // Predicated region
  $region10: #{my_model_forward.3} parent=0 // pred_check
    _
  $region11: #{my_model_forward.3} parent=0 // pred_check_branch
    %13 = sbr.rel (0) target = $region13
  $region12: #{my_model_forward.3} parent=0 // pred_region
    _
  $region13: #{my_model_forward.3} parent=0 // pred_fallthru
    _
  %v15 = vld [vmem:[%s1] sm:$0xf]
  %v16 = vld [vmem:[%s1 + $0x4] sm:$0x1]
  %v17 = vld [vmem:[%s0] sm:$0xff]
  %v18 = vld [vmem:[%s0 + $0x8] sm:$0xf]
  %v19 = vld [vmem:[%s0 + $0xc] sm:$0xff]
  %v20 = vld [vmem:[%s0 + $0x14] sm:$0xf]
  %v21 = vld [vmem:[%s0 + $0x18] sm:$0xff]
  %v22 = vld [vmem:[%s0 + $0x20] sm:$0xf]
  %v23 = vld [vmem:[%s0 + $0x24] sm:$0x11]
  %v24 = vld [vmem:[%s0 + $0x2c] sm:$0x1]
  %v27 = vunpack.c.l.b16 %v15
  %v28 = vunpack.c.l.b16 %v16
  %v29 = vpack.c.b16 %v28, %v27
  %v38 = vunpack.c.l.b16 %v17
  %v39 = vunpack.c.h.b16 %v17
  %v40 = vunpack.c.l.b16 %v18
  %v41 = vunpack.c.l.b16 %v19
  %v42 = vunpack.c.h.b16 %v19
  %v43 = vunpack.c.l.b16 %v20
  %v44 = vunpack.c.l.b16 %v21
  %v45 = vunpack.c.h.b16 %v21
  %v46 = vunpack.c.l.b16 %v22
  %v47 = vunpack.c.l.b16 %v23
  %v48 = vunpack.c.h.b16 %v23
  %v49 = vunpack.c.l.b16 %v24
  %v50 = vpack.c.b16 %v41, %v38
  %v51 = vpack.c.b16 %v42, %v39
  %v52 = vpack.c.b16 %v43, %v40
  %v53 = vpack.c.b16 %v47, %v44
  %v54 = vpack.c.b16 %v48, %v45
  %v55 = vpack.c.b16 %v49, %v46
  %vm59 = vcmask 203776
  %v61 = vsel %vm59, %v29, 0
  %vm63 = vcmask 1043456
  %vm64 = vcmask 1044480
  %v65 = vsel %vm63, 4294967295, 65535
  %v66 = vsel %vm64, %v65, 0
  %v68 = vand.u32 %v53, %v66
  %v71 = vand.u32 %v54, %v66
  %v74 = vand.u32 %v55, %v66
  %76 = vmatpush.bf16.msra.mxu0 0
  %77 = vmatpush.bf16.msra.mxu0 0
  %78 = vmatpush.bf16.msra.mxu0 0
  %79 = vmatpush.bf16.msra.mxu0 0
  %80 = vmatpush.bf16.msra.mxu0 0
  %81 = vmatpush.bf16.msra.mxu0 0
  %82 = vmatpush.bf16.msra.mxu0 %v68
  %83 = vmatpush.bf16.msra.mxu0 %v50
  %84 = vmatmul.bf16.gmra.mxu0 %v61
  %v85 = vpop.f32.mrf.mxu0
  %v86 = vadd.f32 0.0, %v85
  %v87 = vpop.f32.mrf.mxu0
  %v88 = vadd.f32 0.0, %v87
  %89 = vdwg.mxu0
  %90 = vmatpush.bf16.msra.mxu0 0
  %91 = vmatpush.bf16.msra.mxu0 0
  %92 = vmatpush.bf16.msra.mxu0 0
  %93 = vmatpush.bf16.msra.mxu0 0
  %94 = vmatpush.bf16.msra.mxu0 0
  %95 = vmatpush.bf16.msra.mxu0 0
  %96 = vmatpush.bf16.msra.mxu0 %v71
  %97 = vmatpush.bf16.msra.mxu0 %v51
  %98 = vmatmul.bf16.gmra.mxu0 %v61
  %v99 = vpop.f32.mrf.mxu0
  %v100 = vadd.f32 0.0, %v99
  %v101 = vpop.f32.mrf.mxu0
  %v102 = vadd.f32 0.0, %v101
  %103 = vdwg.mxu0
  %104 = vmatpush.bf16.msra.mxu0 0
  %105 = vmatpush.bf16.msra.mxu0 0
  %106 = vmatpush.bf16.msra.mxu0 0
  %107 = vmatpush.bf16.msra.mxu0 0
  %108 = vmatpush.bf16.msra.mxu0 0
  %109 = vmatpush.bf16.msra.mxu0 0
  %110 = vmatpush.bf16.msra.mxu0 %v74
  %111 = vmatpush.bf16.msra.mxu0 %v52
  %112 = vmatmul.bf16.gmra.mxu0 %v61
  %v113 = vpop.f32.mrf.mxu0
  %v114 = vadd.f32 0.0, %v113
  %v115 = vpop.f32.mrf.mxu0
  %v116 = vadd.f32 0.0, %v115
  %117 = vdwg.mxu0
  %s118 = scalar_lea.vmem %s0, 48
  %v119 = vld [vmem:[%s118] sm:$0xff]
  %v120 = vld [vmem:[%s118 + $0x8] sm:$0xf]
  %v121 = vld [vmem:[%s118 + $0xc] sm:$0xff]
  %v122 = vld [vmem:[%s118 + $0x14] sm:$0xf]
  %v123 = vld [vmem:[%s118 + $0x18] sm:$0xff]
  %v124 = vld [vmem:[%s118 + $0x20] sm:$0xf]
  %v125 = vld [vmem:[%s118 + $0x24] sm:$0x11]
  %v126 = vld [vmem:[%s118 + $0x2c] sm:$0x1]
  %v135 = vunpack.c.l.b16 %v119
  %v136 = vunpack.c.h.b16 %v119
  %v137 = vunpack.c.l.b16 %v120
  %v138 = vunpack.c.l.b16 %v121
  %v139 = vunpack.c.h.b16 %v121
  %v140 = vunpack.c.l.b16 %v122
  %v141 = vunpack.c.l.b16 %v123
  %v142 = vunpack.c.h.b16 %v123
  %v143 = vunpack.c.l.b16 %v124
  %v144 = vunpack.c.l.b16 %v125
  %v145 = vunpack.c.h.b16 %v125
  %v146 = vunpack.c.l.b16 %v126
  %v147 = vpack.c.b16 %v138, %v135
  %v148 = vpack.c.b16 %v139, %v136
  %v149 = vpack.c.b16 %v140, %v137
  %v150 = vpack.c.b16 %v144, %v141
  %v151 = vpack.c.b16 %v145, %v142
  %v152 = vpack.c.b16 %v146, %v143
  %v157 = vand.u32 %v150, %v66
  %v160 = vand.u32 %v151, %v66
  %v163 = vand.u32 %v152, %v66
  %165 = vmatpush.bf16.msra.mxu0 0
  %166 = vmatpush.bf16.msra.mxu0 0
  %167 = vmatpush.bf16.msra.mxu0 0
  %168 = vmatpush.bf16.msra.mxu0 0
  %169 = vmatpush.bf16.msra.mxu0 0
  %170 = vmatpush.bf16.msra.mxu0 0
  %171 = vmatpush.bf16.msra.mxu0 %v157
  %172 = vmatpush.bf16.msra.mxu0 %v147
  %173 = vmatmul.bf16.gmra.mxu0 %v61
  %v174 = vpop.f32.mrf.mxu0
  %v175 = vadd.f32 0.0, %v174
  %v176 = vpop.f32.mrf.mxu0
  %v177 = vadd.f32 0.0, %v176
  %178 = vdwg.mxu0
  %179 = vmatpush.bf16.msra.mxu0 0
  %180 = vmatpush.bf16.msra.mxu0 0
  %181 = vmatpush.bf16.msra.mxu0 0
  %182 = vmatpush.bf16.msra.mxu0 0
  %183 = vmatpush.bf16.msra.mxu0 0
  %184 = vmatpush.bf16.msra.mxu0 0
  %185 = vmatpush.bf16.msra.mxu0 %v160
  %186 = vmatpush.bf16.msra.mxu0 %v148
  %187 = vmatmul.bf16.gmra.mxu0 %v61
  %v188 = vpop.f32.mrf.mxu0
  %v189 = vadd.f32 0.0, %v188
  %v190 = vpop.f32.mrf.mxu0
  %v191 = vadd.f32 0.0, %v190
  %192 = vdwg.mxu0
  %193 = vmatpush.bf16.msra.mxu0 0
  %194 = vmatpush.bf16.msra.mxu0 0
  %195 = vmatpush.bf16.msra.mxu0 0
  %196 = vmatpush.bf16.msra.mxu0 0
  %197 = vmatpush.bf16.msra.mxu0 0
  %198 = vmatpush.bf16.msra.mxu0 0
  %199 = vmatpush.bf16.msra.mxu0 %v163
  %200 = vmatpush.bf16.msra.mxu0 %v149
  %201 = vmatmul.bf16.gmra.mxu0 %v61
  %v202 = vpop.f32.mrf.mxu0
  %v203 = vadd.f32 0.0, %v202
  %v204 = vpop.f32.mrf.mxu0
  %v205 = vadd.f32 0.0, %v204
  %206 = vdwg.mxu0
  %s207 = scalar_lea.vmem %s0, 96
  %v208 = vld [vmem:[%s207] sm:$0xff]
  %v209 = vld [vmem:[%s207 + $0x8] sm:$0xf]
  %v210 = vld [vmem:[%s207 + $0xc] sm:$0xff]
  %v211 = vld [vmem:[%s207 + $0x14] sm:$0xf]
  %v212 = vld [vmem:[%s207 + $0x18] sm:$0xff]
  %v213 = vld [vmem:[%s207 + $0x20] sm:$0xf]
  %v214 = vld [vmem:[%s207 + $0x24] sm:$0x11]
  %v215 = vld [vmem:[%s207 + $0x2c] sm:$0x1]
  %v224 = vunpack.c.l.b16 %v208
  %v225 = vunpack.c.h.b16 %v208
  %v226 = vunpack.c.l.b16 %v209
  %v227 = vunpack.c.l.b16 %v210
  %v228 = vunpack.c.h.b16 %v210
  %v229 = vunpack.c.l.b16 %v211
  %v230 = vunpack.c.l.b16 %v212
  %v231 = vunpack.c.h.b16 %v212
  %v232 = vunpack.c.l.b16 %v213
  %v233 = vunpack.c.l.b16 %v214
  %v234 = vunpack.c.h.b16 %v214
  %v235 = vunpack.c.l.b16 %v215
  %v236 = vpack.c.b16 %v227, %v224
  %v237 = vpack.c.b16 %v228, %v225
  %v238 = vpack.c.b16 %v229, %v226
  %v239 = vpack.c.b16 %v233, %v230
  %v240 = vpack.c.b16 %v234, %v231
  %v241 = vpack.c.b16 %v235, %v232
  %v246 = vand.u32 %v239, %v66
  %v249 = vand.u32 %v240, %v66
  %v252 = vand.u32 %v241, %v66
  %254 = vmatpush.bf16.msra.mxu0 0
  %255 = vmatpush.bf16.msra.mxu0 0
  %256 = vmatpush.bf16.msra.mxu0 0
  %257 = vmatpush.bf16.msra.mxu0 0
  %258 = vmatpush.bf16.msra.mxu0 0
  %259 = vmatpush.bf16.msra.mxu0 0
  %260 = vmatpush.bf16.msra.mxu0 %v246
  %261 = vmatpush.bf16.msra.mxu0 %v236
  %262 = vmatmul.bf16.gmra.mxu0 %v61
  %v263 = vpop.f32.mrf.mxu0
  %v264 = vadd.f32 0.0, %v263
  %v265 = vpop.f32.mrf.mxu0
  %v266 = vadd.f32 0.0, %v265
  %267 = vdwg.mxu0
  %268 = vmatpush.bf16.msra.mxu0 0
  %269 = vmatpush.bf16.msra.mxu0 0
  %270 = vmatpush.bf16.msra.mxu0 0
  %271 = vmatpush.bf16.msra.mxu0 0
  %272 = vmatpush.bf16.msra.mxu0 0
  %273 = vmatpush.bf16.msra.mxu0 0
  %274 = vmatpush.bf16.msra.mxu0 %v249
  %275 = vmatpush.bf16.msra.mxu0 %v237
  %276 = vmatmul.bf16.gmra.mxu0 %v61
  %v277 = vpop.f32.mrf.mxu0
  %v278 = vadd.f32 0.0, %v277
  %v279 = vpop.f32.mrf.mxu0
  %v280 = vadd.f32 0.0, %v279
  %281 = vdwg.mxu0
  %282 = vmatpush.bf16.msra.mxu0 0
  %283 = vmatpush.bf16.msra.mxu0 0
  %284 = vmatpush.bf16.msra.mxu0 0
  %285 = vmatpush.bf16.msra.mxu0 0
  %286 = vmatpush.bf16.msra.mxu0 0
  %287 = vmatpush.bf16.msra.mxu0 0
  %288 = vmatpush.bf16.msra.mxu0 %v252
  %289 = vmatpush.bf16.msra.mxu0 %v238
  %290 = vmatmul.bf16.gmra.mxu0 %v61
  %v291 = vpop.f32.mrf.mxu0
  %v292 = vadd.f32 0.0, %v291
  %v293 = vpop.f32.mrf.mxu0
  %v294 = vadd.f32 0.0, %v293
  %295 = vdwg.mxu0
  %s296 = scalar_lea.vmem %s0, 144
  %v297 = vld [vmem:[%s296] sm:$0xff]
  %v298 = vld [vmem:[%s296 + $0x8] sm:$0xf]
  %v299 = vld [vmem:[%s296 + $0xc] sm:$0xff]
  %v300 = vld [vmem:[%s296 + $0x14] sm:$0xf]
  %v301 = vld [vmem:[%s296 + $0x18] sm:$0xff]
  %v302 = vld [vmem:[%s296 + $0x20] sm:$0xf]
  %v303 = vld [vmem:[%s296 + $0x24] sm:$0x11]
  %v304 = vld [vmem:[%s296 + $0x2c] sm:$0x1]
  %v313 = vunpack.c.l.b16 %v297
  %v314 = vunpack.c.h.b16 %v297
  %v315 = vunpack.c.l.b16 %v298
  %v316 = vunpack.c.l.b16 %v299
  %v317 = vunpack.c.h.b16 %v299
  %v318 = vunpack.c.l.b16 %v300
  %v319 = vunpack.c.l.b16 %v301
  %v320 = vunpack.c.h.b16 %v301
  %v321 = vunpack.c.l.b16 %v302
  %v322 = vunpack.c.l.b16 %v303
  %v323 = vunpack.c.h.b16 %v303
  %v324 = vunpack.c.l.b16 %v304
  %v325 = vpack.c.b16 %v316, %v313
  %v326 = vpack.c.b16 %v317, %v314
  %v327 = vpack.c.b16 %v318, %v315
  %v328 = vpack.c.b16 %v322, %v319
  %v329 = vpack.c.b16 %v323, %v320
  %v330 = vpack.c.b16 %v324, %v321
  %v335 = vand.u32 %v328, %v66
  %v338 = vand.u32 %v329, %v66
  %v341 = vand.u32 %v330, %v66
  %343 = vmatpush.bf16.msra.mxu0 0
  %344 = vmatpush.bf16.msra.mxu0 0
  %345 = vmatpush.bf16.msra.mxu0 0
  %346 = vmatpush.bf16.msra.mxu0 0
  %347 = vmatpush.bf16.msra.mxu0 0
  %348 = vmatpush.bf16.msra.mxu0 0
  %349 = vmatpush.bf16.msra.mxu0 %v335
  %350 = vmatpush.bf16.msra.mxu0 %v325
  %351 = vmatmul.bf16.gmra.mxu0 %v61
  %v352 = vpop.f32.mrf.mxu0
  %v353 = vadd.f32 0.0, %v352
  %v354 = vpop.f32.mrf.mxu0
  %v355 = vadd.f32 0.0, %v354
  %356 = vdwg.mxu0
  %357 = vmatpush.bf16.msra.mxu0 0
  %358 = vmatpush.bf16.msra.mxu0 0
  %359 = vmatpush.bf16.msra.mxu0 0
  %360 = vmatpush.bf16.msra.mxu0 0
  %361 = vmatpush.bf16.msra.mxu0 0
  %362 = vmatpush.bf16.msra.mxu0 0
  %363 = vmatpush.bf16.msra.mxu0 %v338
  %364 = vmatpush.bf16.msra.mxu0 %v326
  %365 = vmatmul.bf16.gmra.mxu0 %v61
  %v366 = vpop.f32.mrf.mxu0
  %v367 = vadd.f32 0.0, %v366
  %v368 = vpop.f32.mrf.mxu0
  %v369 = vadd.f32 0.0, %v368
  %370 = vdwg.mxu0
  %371 = vmatpush.bf16.msra.mxu0 0
  %372 = vmatpush.bf16.msra.mxu0 0
  %373 = vmatpush.bf16.msra.mxu0 0
  %374 = vmatpush.bf16.msra.mxu0 0
  %375 = vmatpush.bf16.msra.mxu0 0
  %376 = vmatpush.bf16.msra.mxu0 0
  %377 = vmatpush.bf16.msra.mxu0 %v341
  %378 = vmatpush.bf16.msra.mxu0 %v327
  %379 = vmatmul.bf16.gmra.mxu0 %v61
  %v380 = vpop.f32.mrf.mxu0
  %v381 = vadd.f32 0.0, %v380
  %v382 = vpop.f32.mrf.mxu0
  %v383 = vadd.f32 0.0, %v382
  %384 = vdwg.mxu0
  %v385 = vmax.f32 %v86, %v175
  %v386 = vmax.f32 %v100, %v189
  %v387 = vmax.f32 %v114, %v203
  %v388 = vmax.f32 %v88, %v177
  %v389 = vmax.f32 %v102, %v191
  %v390 = vmax.f32 %v116, %v205
  %v391 = vmax.f32 %v264, %v353
  %v392 = vmax.f32 %v278, %v367
  %v393 = vmax.f32 %v292, %v381
  %v394 = vmax.f32 %v266, %v355
  %v395 = vmax.f32 %v280, %v369
  %v396 = vmax.f32 %v294, %v383
  %v397 = vmax.f32 %v385, %v391
  %v398 = vmax.f32 %v386, %v392
  %v399 = vmax.f32 %v387, %v393
  %v400 = vmax.f32 %v388, %v394
  %v401 = vmax.f32 %v389, %v395
  %v402 = vmax.f32 %v390, %v396
  %v403 = vld [vmem:[%s2] sm:$0xff]
  %v404 = vld [vmem:[%s2 + $0x8] sm:$0x3]
  %406 = vset.pattern.permute.xlu0 0
  %407 = vperm.xlu0 %406, %v403
  %v408 = vpop.permute.xlu0 %407
  %411 = vset.pattern.permute.xlu0 0
  %412 = vperm.xlu0 %411, %v404
  %v413 = vpop.permute.xlu0 %412
  %v415 = vadd.f32 %v397, %v408
  %v416 = vadd.f32 %v398, %v408
  %v417 = vadd.f32 %v399, %v408
  %v418 = vadd.f32 %v400, %v413
  %v419 = vadd.f32 %v401, %v413
  %v420 = vadd.f32 %v402, %v413
  %v421 = vmax.f32 %v415, 0.0
  %v422 = vmax.f32 %v416, 0.0
  %v423 = vmax.f32 %v417, 0.0
  %v424 = vmax.f32 %v418, 0.0
  %v425 = vmax.f32 %v419, 0.0
  %v426 = vmax.f32 %v420, 0.0
  %427 = vst [vmem:[%s3] sm:$0xff] %v421
  %428 = vst [vmem:[%s3 + $0x8] sm:$0xff] %v422
  %vm429 = vcmask 261120
  %430 = vst.msk [vmem:[%s3 + $0x10] sm:$0xff] %vm429, %v423
  %431 = vst [vmem:[%s3 + $0x18] sm:$0x3] %v424
  %432 = vst [vmem:[%s3 + $0x20] sm:$0x3] %v425
  %vm433 = vcmask 254976
  %434 = vst.msk [vmem:[%s3 + $0x28] sm:$0x3] %vm433, %v426
  // Predicated region
  $region14: #{my_model_forward.3} parent=0 // pred_check
    _
  $region15: #{my_model_forward.3} parent=0 // pred_check_branch
    %436 = sbr.rel (0) target = $region17
  $region16: #{my_model_forward.3} parent=0 // pred_region
    _
  $region17: #{my_model_forward.3} parent=0 // pred_fallthru
    _
  // Predicated region
  $region18: #{my_model_forward.3} parent=0 // pred_check
    _
  $region19: #{my_model_forward.3} parent=0 // pred_check_branch
    %438 = sbr.rel (0) target = $region21
  $region20: #{my_model_forward.3} parent=0 // pred_region
    _
  $region21: #{my_model_forward.3} parent=0 // pred_fallthru
    _

// kernel: my_model_forward.4
$region0: #{my_model_forward.4}
  #allocation0 [shape = 'u32[]', space=smem, size = 0x4, offset = 0x4, fixed_abs, tag = 'smem constant byte address 0x4 - core index']
  #allocation1 [shape = 'u32[72,128]{1,0:T(1,128)}', space=vmem, size = 0x9000, scoped, tag = 'internal scratch']
  %s0 = inlined_call_operand.vmem [shape: bf16[4,250,32], index: 0, kind: input, shape index: {}]
  %s1 = inlined_call_operand.vmem [shape: bf16[20,250], index: 1, kind: input, shape index: {}]
  %s2 = inlined_call_operand.vmem [shape: f32[20,1], index: 2, kind: input, shape index: {}]
  %s3 = inlined_call_operand.vmem [shape: f32[20,32], index: 3, kind: output, shape index: {}]
  %s4 = sld [smem:[#allocation0]]
  $region22: #{my_model_forward.4} parent=0
    _
  %s6 = ssub.s32 1, %s4
  %s7 = scalar_select 0, %s6, %s4
  // Predicated region
  $region2: #{my_model_forward.4} parent=0 // pred_check
    _
  $region3: #{my_model_forward.4} parent=0 // pred_check_branch
    %9 = sbr.rel (0) target = $region5
  $region4: #{my_model_forward.4} parent=0 // pred_region
    _
  $region5: #{my_model_forward.4} parent=0 // pred_fallthru
    _
  // Predicated region
  $region6: #{my_model_forward.4} parent=0 // pred_check
    _
  $region7: #{my_model_forward.4} parent=0 // pred_check_branch
    %11 = sbr.rel (0) target = $region9
  $region8: #{my_model_forward.4} parent=0 // pred_region
    _
  $region9: #{my_model_forward.4} parent=0 // pred_fallthru
    _
  // Predicated region
  $region10: #{my_model_forward.4} parent=0 // pred_check
    _
  $region11: #{my_model_forward.4} parent=0 // pred_check_branch
    %13 = sbr.rel (0) target = $region13
  $region12: #{my_model_forward.4} parent=0 // pred_region
    _
  $region13: #{my_model_forward.4} parent=0 // pred_fallthru
    _
  %v14 = vld [vmem:[%s1] sm:$0xff]
  %v15 = vld [vmem:[%s1 + $0x8] sm:$0xff]
  %v16 = vld [vmem:[%s1 + $0x10] sm:$0x33]
  %v17 = vld [vmem:[%s0] sm:$0xf]
  %v18 = vld [vmem:[%s0 + $0x4] sm:$0xf]
  %v19 = vld [vmem:[%s0 + $0x8] sm:$0xf]
  %v20 = vld [vmem:[%s0 + $0xc] sm:$0xf]
  %v21 = vld [vmem:[%s0 + $0x10] sm:$0xf]
  %v22 = vld [vmem:[%s0 + $0x14] sm:$0xf]
  %v23 = vld [vmem:[%s0 + $0x18] sm:$0xf]
  %v24 = vld [vmem:[%s0 + $0x1c] sm:$0xf]
  %v25 = vld [vmem:[%s0 + $0x20] sm:$0xf]
  %v26 = vld [vmem:[%s0 + $0x24] sm:$0xf]
  %v27 = vld [vmem:[%s0 + $0x28] sm:$0xf]
  %v28 = vld [vmem:[%s0 + $0x2c] sm:$0xf]
  %v29 = vld [vmem:[%s0 + $0x30] sm:$0xf]
  %v30 = vld [vmem:[%s0 + $0x34] sm:$0xf]
  %v31 = vld [vmem:[%s0 + $0x38] sm:$0xf]
  %v32 = vld [vmem:[%s0 + $0x3c] sm:$0xf]
  %v33 = vld [vmem:[%s0 + $0x40] sm:$0xf]
  %v34 = vld [vmem:[%s0 + $0x44] sm:$0xf]
  %v35 = vld [vmem:[%s0 + $0x48] sm:$0xf]
  %v36 = vld [vmem:[%s0 + $0x4c] sm:$0xf]
  %v37 = vld [vmem:[%s0 + $0x50] sm:$0xf]
  %v38 = vld [vmem:[%s0 + $0x54] sm:$0xf]
  %v39 = vld [vmem:[%s0 + $0x58] sm:$0xf]
  %v40 = vld [vmem:[%s0 + $0x5c] sm:$0xf]
  %v41 = vld [vmem:[%s0 + $0x60] sm:$0xf]
  %v42 = vld [vmem:[%s0 + $0x64] sm:$0xf]
  %v43 = vld [vmem:[%s0 + $0x68] sm:$0xf]
  %v44 = vld [vmem:[%s0 + $0x6c] sm:$0xf]
  %v45 = vld [vmem:[%s0 + $0x70] sm:$0xf]
  %v46 = vld [vmem:[%s0 + $0x74] sm:$0xf]
  %v47 = vld [vmem:[%s0 + $0x78] sm:$0xf]
  %v48 = vld [vmem:[%s0 + $0x7c] sm:$0x1]
  %v52 = vunpack.c.l.b16 %v14
  %v53 = vunpack.c.h.b16 %v14
  %v54 = vunpack.c.l.b16 %v15
  %v55 = vunpack.c.h.b16 %v15
  %v56 = vunpack.c.l.b16 %v16
  %v57 = vunpack.c.h.b16 %v16
  %v58 = vpack.c.b16 %v54, %v52
  %v59 = vpack.c.b16 %v55, %v53
  %v60 = vpack.c.b16 %v56, %v56
  %v61 = vpack.c.b16 %v57, %v57
  %v96 = vunpack.c.l.b16 %v17
  %v97 = vunpack.c.l.b16 %v18
  %v98 = vunpack.c.l.b16 %v19
  %v99 = vunpack.c.l.b16 %v20
  %v100 = vunpack.c.l.b16 %v21
  %v101 = vunpack.c.l.b16 %v22
  %v102 = vunpack.c.l.b16 %v23
  %v103 = vunpack.c.l.b16 %v24
  %v104 = vunpack.c.l.b16 %v25
  %v105 = vunpack.c.l.b16 %v26
  %v106 = vunpack.c.l.b16 %v27
  %v107 = vunpack.c.l.b16 %v28
  %v108 = vunpack.c.l.b16 %v29
  %v109 = vunpack.c.l.b16 %v30
  %v110 = vunpack.c.l.b16 %v31
  %v111 = vunpack.c.l.b16 %v32
  %v112 = vunpack.c.l.b16 %v33
  %v113 = vunpack.c.l.b16 %v34
  %v114 = vunpack.c.l.b16 %v35
  %v115 = vunpack.c.l.b16 %v36
  %v116 = vunpack.c.l.b16 %v37
  %v117 = vunpack.c.l.b16 %v38
  %v118 = vunpack.c.l.b16 %v39
  %v119 = vunpack.c.l.b16 %v40
  %v120 = vunpack.c.l.b16 %v41
  %v121 = vunpack.c.l.b16 %v42
  %v122 = vunpack.c.l.b16 %v43
  %v123 = vunpack.c.l.b16 %v44
  %v124 = vunpack.c.l.b16 %v45
  %v125 = vunpack.c.l.b16 %v46
  %v126 = vunpack.c.l.b16 %v47
  %v127 = vunpack.c.l.b16 %v48
  %v128 = vpack.c.b16 %v97, %v96
  %v129 = vpack.c.b16 %v99, %v98
  %v130 = vpack.c.b16 %v101, %v100
  %v131 = vpack.c.b16 %v103, %v102
  %v132 = vpack.c.b16 %v105, %v104
  %v133 = vpack.c.b16 %v107, %v106
  %v134 = vpack.c.b16 %v109, %v108
  %v135 = vpack.c.b16 %v111, %v110
  %v136 = vpack.c.b16 %v113, %v112
  %v137 = vpack.c.b16 %v115, %v114
  %v138 = vpack.c.b16 %v117, %v116
  %v139 = vpack.c.b16 %v119, %v118
  %v140 = vpack.c.b16 %v121, %v120
  %v141 = vpack.c.b16 %v123, %v122
  %v142 = vpack.c.b16 %v125, %v124
  %v143 = vpack.c.b16 %v127, %v126
  %vm159 = vcmask 998400
  %v161 = vsel %vm159, %v59, 0
  %v164 = vsel %vm159, %v61, 0
  %vm166 = vcmask 1044480
  %v168 = vsel %vm166, %v143, 0
  %170 = vmatpush.bf16.msra.mxu0 %v135
  %171 = vmatpush.bf16.msra.mxu0 %v134
  %172 = vmatpush.bf16.msra.mxu0 %v133
  %173 = vmatpush.bf16.msra.mxu0 %v132
  %174 = vmatpush.bf16.msra.mxu0 %v131
  %175 = vmatpush.bf16.msra.mxu0 %v130
  %176 = vmatpush.bf16.msra.mxu0 %v129
  %177 = vmatpush.bf16.msra.mxu0 %v128
  %178 = vmatmul.bf16.gmra.mxu0 %v58
  %v179 = vpop.f32.mrf.mxu0
  %v180 = vadd.f32 0.0, %v179
  %v181 = vpop.f32.mrf.mxu0
  %v182 = vadd.f32 0.0, %v181
  %183 = vmatmul.bf16.gmra.mxu0 %v60
  %v184 = vpop.f32.mrf.mxu0
  %v185 = vadd.f32 0.0, %v184
  %v186 = vpop.f32.mrf.mxu0
  %187 = vdwg.mxu0
  %188 = vmatpush.bf16.msra.mxu0 %v168
  %189 = vmatpush.bf16.msra.mxu0 %v142
  %190 = vmatpush.bf16.msra.mxu0 %v141
  %191 = vmatpush.bf16.msra.mxu0 %v140
  %192 = vmatpush.bf16.msra.mxu0 %v139
  %193 = vmatpush.bf16.msra.mxu0 %v138
  %194 = vmatpush.bf16.msra.mxu0 %v137
  %195 = vmatpush.bf16.msra.mxu0 %v136
  %196 = vmatmul.bf16.gmra.mxu0 %v161
  %v197 = vpop.f32.mrf.mxu0
  %v198 = vadd.f32 %v180, %v197
  %v199 = vpop.f32.mrf.mxu0
  %v200 = vadd.f32 %v182, %v199
  %201 = vmatmul.bf16.gmra.mxu0 %v164
  %v202 = vpop.f32.mrf.mxu0
  %v203 = vadd.f32 %v185, %v202
  %v204 = vpop.f32.mrf.mxu0
  %205 = vdwg.mxu0
  %s206 = scalar_lea.vmem %s0, 128
  %v207 = vld [vmem:[%s206] sm:$0xf]
  %v208 = vld [vmem:[%s206 + $0x4] sm:$0xf]
  %v209 = vld [vmem:[%s206 + $0x8] sm:$0xf]
  %v210 = vld [vmem:[%s206 + $0xc] sm:$0xf]
  %v211 = vld [vmem:[%s206 + $0x10] sm:$0xf]
  %v212 = vld [vmem:[%s206 + $0x14] sm:$0xf]
  %v213 = vld [vmem:[%s206 + $0x18] sm:$0xf]
  %v214 = vld [vmem:[%s206 + $0x1c] sm:$0xf]
  %v215 = vld [vmem:[%s206 + $0x20] sm:$0xf]
  %v216 = vld [vmem:[%s206 + $0x24] sm:$0xf]
  %v217 = vld [vmem:[%s206 + $0x28] sm:$0xf]
  %v218 = vld [vmem:[%s206 + $0x2c] sm:$0xf]
  %v219 = vld [vmem:[%s206 + $0x30] sm:$0xf]
  %v220 = vld [vmem:[%s206 + $0x34] sm:$0xf]
  %v221 = vld [vmem:[%s206 + $0x38] sm:$0xf]
  %v222 = vld [vmem:[%s206 + $0x3c] sm:$0xf]
  %v223 = vld [vmem:[%s206 + $0x40] sm:$0xf]
  %v224 = vld [vmem:[%s206 + $0x44] sm:$0xf]
  %v225 = vld [vmem:[%s206 + $0x48] sm:$0xf]
  %v226 = vld [vmem:[%s206 + $0x4c] sm:$0xf]
  %v227 = vld [vmem:[%s206 + $0x50] sm:$0xf]
  %v228 = vld [vmem:[%s206 + $0x54] sm:$0xf]
  %v229 = vld [vmem:[%s206 + $0x58] sm:$0xf]
  %v230 = vld [vmem:[%s206 + $0x5c] sm:$0xf]
  %v231 = vld [vmem:[%s206 + $0x60] sm:$0xf]
  %v232 = vld [vmem:[%s206 + $0x64] sm:$0xf]
  %v233 = vld [vmem:[%s206 + $0x68] sm:$0xf]
  %v234 = vld [vmem:[%s206 + $0x6c] sm:$0xf]
  %v235 = vld [vmem:[%s206 + $0x70] sm:$0xf]
  %v236 = vld [vmem:[%s206 + $0x74] sm:$0xf]
  %v237 = vld [vmem:[%s206 + $0x78] sm:$0xf]
  %v238 = vld [vmem:[%s206 + $0x7c] sm:$0x1]
  %v271 = vunpack.c.l.b16 %v207
  %v272 = vunpack.c.l.b16 %v208
  %v273 = vunpack.c.l.b16 %v209
  %v274 = vunpack.c.l.b16 %v210
  %v275 = vunpack.c.l.b16 %v211
  %v276 = vunpack.c.l.b16 %v212
  %v277 = vunpack.c.l.b16 %v213
  %v278 = vunpack.c.l.b16 %v214
  %v279 = vunpack.c.l.b16 %v215
  %v280 = vunpack.c.l.b16 %v216
  %v281 = vunpack.c.l.b16 %v217
  %v282 = vunpack.c.l.b16 %v218
  %v283 = vunpack.c.l.b16 %v219
  %v284 = vunpack.c.l.b16 %v220
  %v285 = vunpack.c.l.b16 %v221
  %v286 = vunpack.c.l.b16 %v222
  %v287 = vunpack.c.l.b16 %v223
  %v288 = vunpack.c.l.b16 %v224
  %v289 = vunpack.c.l.b16 %v225
  %v290 = vunpack.c.l.b16 %v226
  %v291 = vunpack.c.l.b16 %v227
  %v292 = vunpack.c.l.b16 %v228
  %v293 = vunpack.c.l.b16 %v229
  %v294 = vunpack.c.l.b16 %v230
  %v295 = vunpack.c.l.b16 %v231
  %v296 = vunpack.c.l.b16 %v232
  %v297 = vunpack.c.l.b16 %v233
  %v298 = vunpack.c.l.b16 %v234
  %v299 = vunpack.c.l.b16 %v235
  %v300 = vunpack.c.l.b16 %v236
  %v301 = vunpack.c.l.b16 %v237
  %v302 = vunpack.c.l.b16 %v238
  %v303 = vpack.c.b16 %v272, %v271
  %v304 = vpack.c.b16 %v274, %v273
  %v305 = vpack.c.b16 %v276, %v275
  %v306 = vpack.c.b16 %v278, %v277
  %v307 = vpack.c.b16 %v280, %v279
  %v308 = vpack.c.b16 %v282, %v281
  %v309 = vpack.c.b16 %v284, %v283
  %v310 = vpack.c.b16 %v286, %v285
  %v311 = vpack.c.b16 %v288, %v287
  %v312 = vpack.c.b16 %v290, %v289
  %v313 = vpack.c.b16 %v292, %v291
  %v314 = vpack.c.b16 %v294, %v293
  %v315 = vpack.c.b16 %v296, %v295
  %v316 = vpack.c.b16 %v298, %v297
  %v317 = vpack.c.b16 %v300, %v299
  %v318 = vpack.c.b16 %v302, %v301
  %v335 = vsel %vm166, %v318, 0
  %337 = vmatpush.bf16.msra.mxu0 %v310
  %338 = vmatpush.bf16.msra.mxu0 %v309
  %339 = vmatpush.bf16.msra.mxu0 %v308
  %340 = vmatpush.bf16.msra.mxu0 %v307
  %341 = vmatpush.bf16.msra.mxu0 %v306
  %342 = vmatpush.bf16.msra.mxu0 %v305
  %343 = vmatpush.bf16.msra.mxu0 %v304
  %344 = vmatpush.bf16.msra.mxu0 %v303
  %345 = vmatmul.bf16.gmra.mxu0 %v58
  %v346 = vpop.f32.mrf.mxu0
  %v347 = vadd.f32 0.0, %v346
  %v348 = vpop.f32.mrf.mxu0
  %v349 = vadd.f32 0.0, %v348
  %350 = vmatmul.bf16.gmra.mxu0 %v60
  %v351 = vpop.f32.mrf.mxu0
  %v352 = vadd.f32 0.0, %v351
  %v353 = vpop.f32.mrf.mxu0
  %354 = vdwg.mxu0
  %355 = vmatpush.bf16.msra.mxu0 %v335
  %356 = vmatpush.bf16.msra.mxu0 %v317
  %357 = vmatpush.bf16.msra.mxu0 %v316
  %358 = vmatpush.bf16.msra.mxu0 %v315
  %359 = vmatpush.bf16.msra.mxu0 %v314
  %360 = vmatpush.bf16.msra.mxu0 %v313
  %361 = vmatpush.bf16.msra.mxu0 %v312
  %362 = vmatpush.bf16.msra.mxu0 %v311
  %363 = vmatmul.bf16.gmra.mxu0 %v161
  %v364 = vpop.f32.mrf.mxu0
  %v365 = vadd.f32 %v347, %v364
  %v366 = vpop.f32.mrf.mxu0
  %v367 = vadd.f32 %v349, %v366
  %368 = vmatmul.bf16.gmra.mxu0 %v164
  %v369 = vpop.f32.mrf.mxu0
  %v370 = vadd.f32 %v352, %v369
  %v371 = vpop.f32.mrf.mxu0
  %372 = vdwg.mxu0
  %s373 = scalar_lea.vmem %s0, 256
  %v374 = vld [vmem:[%s373] sm:$0xf]
  %v375 = vld [vmem:[%s373 + $0x4] sm:$0xf]
  %v376 = vld [vmem:[%s373 + $0x8] sm:$0xf]
  %v377 = vld [vmem:[%s373 + $0xc] sm:$0xf]
  %v378 = vld [vmem:[%s373 + $0x10] sm:$0xf]
  %v379 = vld [vmem:[%s373 + $0x14] sm:$0xf]
  %v380 = vld [vmem:[%s373 + $0x18] sm:$0xf]
  %v381 = vld [vmem:[%s373 + $0x1c] sm:$0xf]
  %v382 = vld [vmem:[%s373 + $0x20] sm:$0xf]
  %v383 = vld [vmem:[%s373 + $0x24] sm:$0xf]
  %v384 = vld [vmem:[%s373 + $0x28] sm:$0xf]
  %v385 = vld [vmem:[%s373 + $0x2c] sm:$0xf]
  %v386 = vld [vmem:[%s373 + $0x30] sm:$0xf]
  %v387 = vld [vmem:[%s373 + $0x34] sm:$0xf]
  %v388 = vld [vmem:[%s373 + $0x38] sm:$0xf]
  %v389 = vld [vmem:[%s373 + $0x3c] sm:$0xf]
  %v390 = vld [vmem:[%s373 + $0x40] sm:$0xf]
  %v391 = vld [vmem:[%s373 + $0x44] sm:$0xf]
  %v392 = vld [vmem:[%s373 + $0x48] sm:$0xf]
  %v393 = vld [vmem:[%s373 + $0x4c] sm:$0xf]
  %v394 = vld [vmem:[%s373 + $0x50] sm:$0xf]
  %v395 = vld [vmem:[%s373 + $0x54] sm:$0xf]
  %v396 = vld [vmem:[%s373 + $0x58] sm:$0xf]
  %v397 = vld [vmem:[%s373 + $0x5c] sm:$0xf]
  %v398 = vld [vmem:[%s373 + $0x60] sm:$0xf]
  %v399 = vld [vmem:[%s373 + $0x64] sm:$0xf]
  %v400 = vld [vmem:[%s373 + $0x68] sm:$0xf]
  %v401 = vld [vmem:[%s373 + $0x6c] sm:$0xf]
  %v402 = vld [vmem:[%s373 + $0x70] sm:$0xf]
  %v403 = vld [vmem:[%s373 + $0x74] sm:$0xf]
  %v404 = vld [vmem:[%s373 + $0x78] sm:$0xf]
  %v405 = vld [vmem:[%s373 + $0x7c] sm:$0x1]
  %v438 = vunpack.c.l.b16 %v374
  %v439 = vunpack.c.l.b16 %v375
  %v440 = vunpack.c.l.b16 %v376
  %v441 = vunpack.c.l.b16 %v377
  %v442 = vunpack.c.l.b16 %v378
  %v443 = vunpack.c.l.b16 %v379
  %v444 = vunpack.c.l.b16 %v380
  %v445 = vunpack.c.l.b16 %v381
  %v446 = vunpack.c.l.b16 %v382
  %v447 = vunpack.c.l.b16 %v383
  %v448 = vunpack.c.l.b16 %v384
  %v449 = vunpack.c.l.b16 %v385
  %v450 = vunpack.c.l.b16 %v386
  %v451 = vunpack.c.l.b16 %v387
  %v452 = vunpack.c.l.b16 %v388
  %v453 = vunpack.c.l.b16 %v389
  %v454 = vunpack.c.l.b16 %v390
  %v455 = vunpack.c.l.b16 %v391
  %v456 = vunpack.c.l.b16 %v392
  %v457 = vunpack.c.l.b16 %v393
  %v458 = vunpack.c.l.b16 %v394
  %v459 = vunpack.c.l.b16 %v395
  %v460 = vunpack.c.l.b16 %v396
  %v461 = vunpack.c.l.b16 %v397
  %v462 = vunpack.c.l.b16 %v398
  %v463 = vunpack.c.l.b16 %v399
  %v464 = vunpack.c.l.b16 %v400
  %v465 = vunpack.c.l.b16 %v401
  %v466 = vunpack.c.l.b16 %v402
  %v467 = vunpack.c.l.b16 %v403
  %v468 = vunpack.c.l.b16 %v404
  %v469 = vunpack.c.l.b16 %v405
  %v470 = vpack.c.b16 %v439, %v438
  %v471 = vpack.c.b16 %v441, %v440
  %v472 = vpack.c.b16 %v443, %v442
  %v473 = vpack.c.b16 %v445, %v444
  %v474 = vpack.c.b16 %v447, %v446
  %v475 = vpack.c.b16 %v449, %v448
  %v476 = vpack.c.b16 %v451, %v450
  %v477 = vpack.c.b16 %v453, %v452
  %v478 = vpack.c.b16 %v455, %v454
  %v479 = vpack.c.b16 %v457, %v456
  %v480 = vpack.c.b16 %v459, %v458
  %v481 = vpack.c.b16 %v461, %v460
  %v482 = vpack.c.b16 %v463, %v462
  %v483 = vpack.c.b16 %v465, %v464
  %v484 = vpack.c.b16 %v467, %v466
  %v485 = vpack.c.b16 %v469, %v468
  %v502 = vsel %vm166, %v485, 0
  %504 = vmatpush.bf16.msra.mxu0 %v477
  %505 = vmatpush.bf16.msra.mxu0 %v476
  %506 = vmatpush.bf16.msra.mxu0 %v475
  %507 = vmatpush.bf16.msra.mxu0 %v474
  %508 = vmatpush.bf16.msra.mxu0 %v473
  %509 = vmatpush.bf16.msra.mxu0 %v472
  %510 = vmatpush.bf16.msra.mxu0 %v471
  %511 = vmatpush.bf16.msra.mxu0 %v470
  %512 = vmatmul.bf16.gmra.mxu0 %v58
  %v513 = vpop.f32.mrf.mxu0
  %v514 = vadd.f32 0.0, %v513
  %v515 = vpop.f32.mrf.mxu0
  %v516 = vadd.f32 0.0, %v515
  %517 = vmatmul.bf16.gmra.mxu0 %v60
  %v518 = vpop.f32.mrf.mxu0
  %v519 = vadd.f32 0.0, %v518
  %v520 = vpop.f32.mrf.mxu0
  %521 = vdwg.mxu0
  %522 = vmatpush.bf16.msra.mxu0 %v502
  %523 = vmatpush.bf16.msra.mxu0 %v484
  %524 = vmatpush.bf16.msra.mxu0 %v483
  %525 = vmatpush.bf16.msra.mxu0 %v482
  %526 = vmatpush.bf16.msra.mxu0 %v481
  %527 = vmatpush.bf16.msra.mxu0 %v480
  %528 = vmatpush.bf16.msra.mxu0 %v479
  %529 = vmatpush.bf16.msra.mxu0 %v478
  %530 = vmatmul.bf16.gmra.mxu0 %v161
  %v531 = vpop.f32.mrf.mxu0
  %v532 = vadd.f32 %v514, %v531
  %v533 = vpop.f32.mrf.mxu0
  %v534 = vadd.f32 %v516, %v533
  %535 = vmatmul.bf16.gmra.mxu0 %v164
  %v536 = vpop.f32.mrf.mxu0
  %v537 = vadd.f32 %v519, %v536
  %v538 = vpop.f32.mrf.mxu0
  %539 = vdwg.mxu0
  %s540 = scalar_lea.vmem %s0, 384
  %v541 = vld [vmem:[%s540] sm:$0xf]
  %v542 = vld [vmem:[%s540 + $0x4] sm:$0xf]
  %v543 = vld [vmem:[%s540 + $0x8] sm:$0xf]
  %v544 = vld [vmem:[%s540 + $0xc] sm:$0xf]
  %v545 = vld [vmem:[%s540 + $0x10] sm:$0xf]
  %v546 = vld [vmem:[%s540 + $0x14] sm:$0xf]
  %v547 = vld [vmem:[%s540 + $0x18] sm:$0xf]
  %v548 = vld [vmem:[%s540 + $0x1c] sm:$0xf]
  %v549 = vld [vmem:[%s540 + $0x20] sm:$0xf]
  %v550 = vld [vmem:[%s540 + $0x24] sm:$0xf]
  %v551 = vld [vmem:[%s540 + $0x28] sm:$0xf]
  %v552 = vld [vmem:[%s540 + $0x2c] sm:$0xf]
  %v553 = vld [vmem:[%s540 + $0x30] sm:$0xf]
  %v554 = vld [vmem:[%s540 + $0x34] sm:$0xf]
  %v555 = vld [vmem:[%s540 + $0x38] sm:$0xf]
  %v556 = vld [vmem:[%s540 + $0x3c] sm:$0xf]
  %v557 = vld [vmem:[%s540 + $0x40] sm:$0xf]
  %v558 = vld [vmem:[%s540 + $0x44] sm:$0xf]
  %v559 = vld [vmem:[%s540 + $0x48] sm:$0xf]
  %v560 = vld [vmem:[%s540 + $0x4c] sm:$0xf]
  %v561 = vld [vmem:[%s540 + $0x50] sm:$0xf]
  %v562 = vld [vmem:[%s540 + $0x54] sm:$0xf]
  %v563 = vld [vmem:[%s540 + $0x58] sm:$0xf]
  %v564 = vld [vmem:[%s540 + $0x5c] sm:$0xf]
  %v565 = vld [vmem:[%s540 + $0x60] sm:$0xf]
  %v566 = vld [vmem:[%s540 + $0x64] sm:$0xf]
  %v567 = vld [vmem:[%s540 + $0x68] sm:$0xf]
  %v568 = vld [vmem:[%s540 + $0x6c] sm:$0xf]
  %v569 = vld [vmem:[%s540 + $0x70] sm:$0xf]
  %v570 = vld [vmem:[%s540 + $0x74] sm:$0xf]
  %v571 = vld [vmem:[%s540 + $0x78] sm:$0xf]
  %v572 = vld [vmem:[%s540 + $0x7c] sm:$0x1]
  %v605 = vunpack.c.l.b16 %v541
  %v606 = vunpack.c.l.b16 %v542
  %v607 = vunpack.c.l.b16 %v543
  %v608 = vunpack.c.l.b16 %v544
  %v609 = vunpack.c.l.b16 %v545
  %v610 = vunpack.c.l.b16 %v546
  %v611 = vunpack.c.l.b16 %v547
  %v612 = vunpack.c.l.b16 %v548
  %v613 = vunpack.c.l.b16 %v549
  %v614 = vunpack.c.l.b16 %v550
  %v615 = vunpack.c.l.b16 %v551
  %v616 = vunpack.c.l.b16 %v552
  %v617 = vunpack.c.l.b16 %v553
  %v618 = vunpack.c.l.b16 %v554
  %v619 = vunpack.c.l.b16 %v555
  %v620 = vunpack.c.l.b16 %v556
  %v621 = vunpack.c.l.b16 %v557
  %v622 = vunpack.c.l.b16 %v558
  %v623 = vunpack.c.l.b16 %v559
  %v624 = vunpack.c.l.b16 %v560
  %v625 = vunpack.c.l.b16 %v561
  %v626 = vunpack.c.l.b16 %v562
  %v627 = vunpack.c.l.b16 %v563
  %v628 = vunpack.c.l.b16 %v564
  %v629 = vunpack.c.l.b16 %v565
  %v630 = vunpack.c.l.b16 %v566
  %v631 = vunpack.c.l.b16 %v567
  %v632 = vunpack.c.l.b16 %v568
  %v633 = vunpack.c.l.b16 %v569
  %v634 = vunpack.c.l.b16 %v570
  %v635 = vunpack.c.l.b16 %v571
  %v636 = vunpack.c.l.b16 %v572
  %v637 = vpack.c.b16 %v606, %v605
  %v638 = vpack.c.b16 %v608, %v607
  %v639 = vpack.c.b16 %v610, %v609
  %v640 = vpack.c.b16 %v612, %v611
  %v641 = vpack.c.b16 %v614, %v613
  %v642 = vpack.c.b16 %v616, %v615
  %v643 = vpack.c.b16 %v618, %v617
  %v644 = vpack.c.b16 %v620, %v619
  %v645 = vpack.c.b16 %v622, %v621
  %v646 = vpack.c.b16 %v624, %v623
  %v647 = vpack.c.b16 %v626, %v625
  %v648 = vpack.c.b16 %v628, %v627
  %v649 = vpack.c.b16 %v630, %v629
  %v650 = vpack.c.b16 %v632, %v631
  %v651 = vpack.c.b16 %v634, %v633
  %v652 = vpack.c.b16 %v636, %v635
  %v669 = vsel %vm166, %v652, 0
  %671 = vmatpush.bf16.msra.mxu0 %v644
  %672 = vmatpush.bf16.msra.mxu0 %v643
  %673 = vmatpush.bf16.msra.mxu0 %v642
  %674 = vmatpush.bf16.msra.mxu0 %v641
  %675 = vmatpush.bf16.msra.mxu0 %v640
  %676 = vmatpush.bf16.msra.mxu0 %v639
  %677 = vmatpush.bf16.msra.mxu0 %v638
  %678 = vmatpush.bf16.msra.mxu0 %v637
  %679 = vmatmul.bf16.gmra.mxu0 %v58
  %v680 = vpop.f32.mrf.mxu0
  %v681 = vadd.f32 0.0, %v680
  %v682 = vpop.f32.mrf.mxu0
  %v683 = vadd.f32 0.0, %v682
  %684 = vmatmul.bf16.gmra.mxu0 %v60
  %v685 = vpop.f32.mrf.mxu0
  %v686 = vadd.f32 0.0, %v685
  %v687 = vpop.f32.mrf.mxu0
  %688 = vdwg.mxu0
  %689 = vmatpush.bf16.msra.mxu0 %v669
  %690 = vmatpush.bf16.msra.mxu0 %v651
  %691 = vmatpush.bf16.msra.mxu0 %v650
  %692 = vmatpush.bf16.msra.mxu0 %v649
  %693 = vmatpush.bf16.msra.mxu0 %v648
  %694 = vmatpush.bf16.msra.mxu0 %v647
  %695 = vmatpush.bf16.msra.mxu0 %v646
  %696 = vmatpush.bf16.msra.mxu0 %v645
  %697 = vmatmul.bf16.gmra.mxu0 %v161
  %v698 = vpop.f32.mrf.mxu0
  %v699 = vadd.f32 %v681, %v698
  %v700 = vpop.f32.mrf.mxu0
  %v701 = vadd.f32 %v683, %v700
  %702 = vmatmul.bf16.gmra.mxu0 %v164
  %v703 = vpop.f32.mrf.mxu0
  %v704 = vadd.f32 %v686, %v703
  %v705 = vpop.f32.mrf.mxu0
  %706 = vdwg.mxu0
  %v707 = vmax.f32 %v198, %v365
  %v708 = vmax.f32 %v200, %v367
  %v709 = vmax.f32 %v203, %v370
  %v710 = vmax.f32 %v532, %v699
  %v711 = vmax.f32 %v534, %v701
  %v712 = vmax.f32 %v537, %v704
  %v713 = vmax.f32 %v707, %v710
  %v714 = vmax.f32 %v708, %v711
  %v715 = vmax.f32 %v709, %v712
  %v716 = vld [vmem:[%s2] sm:$0xff]
  %v717 = vld [vmem:[%s2 + $0x8] sm:$0xff]
  %v718 = vld [vmem:[%s2 + $0x10] sm:$0xf]
  %720 = vset.pattern.permute.xlu0 0
  %721 = vperm.xlu0 %720, %v716
  %v722 = vpop.permute.xlu0 %721
  %725 = vset.pattern.permute.xlu0 0
  %726 = vperm.xlu0 %725, %v717
  %v727 = vpop.permute.xlu0 %726
  %730 = vset.pattern.permute.xlu0 0
  %731 = vperm.xlu0 %730, %v718
  %v732 = vpop.permute.xlu0 %731
  %v734 = vadd.f32 %v713, %v722
  %v735 = vadd.f32 %v714, %v727
  %v736 = vadd.f32 %v715, %v732
  %v737 = vmax.f32 %v734, 0.0
  %v738 = vmax.f32 %v735, 0.0
  %v739 = vmax.f32 %v736, 0.0
  %vm740 = vcmask 261120
  %741 = vst.msk [vmem:[%s3] sm:$0xff] %vm740, %v737
  %742 = vst.msk [vmem:[%s3 + $0x8] sm:$0xff] %vm740, %v738
  %vm743 = vcmask 257024
  %744 = vst.msk [vmem:[%s3 + $0x10] sm:$0xf] %vm743, %v739
  // Predicated region
  $region14: #{my_model_forward.4} parent=0 // pred_check
    _
  $region15: #{my_model_forward.4} parent=0 // pred_check_branch
    %746 = sbr.rel (0) target = $region17
  $region16: #{my_model_forward.4} parent=0 // pred_region
    _
  $region17: #{my_model_forward.4} parent=0 // pred_fallthru
    _
  // Predicated region
  $region18: #{my_model_forward.4} parent=0 // pred_check
    _
  $region19: #{my_model_forward.4} parent=0 // pred_check_branch
    %748 = sbr.rel (0) target = $region21
  $region20: #{my_model_forward.4} parent=0 // pred_region
    _
  $region21: #{my_model_forward.4} parent=0 // pred_fallthru
    _

// kernel: my_model_forward.5
$region0: #{my_model_forward.5}
  #allocation0 [shape = 'u32[]', space=smem, size = 0x4, offset = 0x4, fixed_abs, tag = 'smem constant byte address 0x4 - core index']
  #allocation1 [shape = 'u32[72,128]{1,0:T(1,128)}', space=vmem, size = 0x9000, scoped, tag = 'internal scratch']
  %s0 = inlined_call_operand.vmem [shape: f32[2,320], index: 0, kind: input, shape index: {}]
  %s1 = inlined_call_operand.vmem [shape: bf16[320,50], index: 1, kind: input, shape index: {}]
  %s2 = inlined_call_operand.vmem [shape: f32[1,50], index: 2, kind: input, shape index: {}]
  %s3 = inlined_call_operand.vmem [shape: bf16[50,10], index: 3, kind: input, shape index: {}]
  %s4 = inlined_call_operand.vmem [shape: f32[1,10], index: 4, kind: input, shape index: {}]
  %s5 = inlined_call_operand.hbm [shape: f32[2,10], index: 5, kind: output, shape index: {}]
  %s6 = sld [smem:[#allocation0]]
  $region30: #{my_model_forward.5} parent=0
    _
  %s8 = ssub.s32 1, %s6
  %s9 = scalar_select 0, %s8, %s6
  $region1: #{my_model_forward.5} parent=0
    #allocation2 [shape = 'u8[1024]{0}', space=vmem, size = 0x400, scoped, tag = 'output window, operand 0, single buffered']
    #allocation3 [shape = 's32[1]{0}', space=sflag, size = 0x4, scoped, tag = 'scoped memory for my_model_forward.5']
    %10 = vsyncpa [#allocation3], 0
    // Predicated region
    $region2: #{my_model_forward.5} parent=1 // pred_check
      _
    $region3: #{my_model_forward.5} parent=1 // pred_check_branch
      %12 = sbr.rel (0) target = $region5
    $region4: #{my_model_forward.5} parent=1 // pred_region
      _
    $region5: #{my_model_forward.5} parent=1 // pred_fallthru
      _
    // Predicated region
    $region6: #{my_model_forward.5} parent=1 // pred_check
      _
    $region7: #{my_model_forward.5} parent=1 // pred_check_branch
      %14 = sbr.rel (0) target = $region9
    $region8: #{my_model_forward.5} parent=1 // pred_region
      _
    $region9: #{my_model_forward.5} parent=1 // pred_fallthru
      _
    // Predicated region
    $region10: #{my_model_forward.5} parent=1 // pred_check
      _
    $region11: #{my_model_forward.5} parent=1 // pred_check_branch
      %16 = sbr.rel (0) target = $region13
    $region12: #{my_model_forward.5} parent=1 // pred_region
      _
    $region13: #{my_model_forward.5} parent=1 // pred_fallthru
      _
    // Predicated region
    $region14: #{my_model_forward.5} parent=1 // pred_check
      _
    $region15: #{my_model_forward.5} parent=1 // pred_check_branch
      %18 = sbr.rel (0) target = $region17
    $region16: #{my_model_forward.5} parent=1 // pred_region
      _
    $region17: #{my_model_forward.5} parent=1 // pred_fallthru
      _
    // Predicated region
    $region18: #{my_model_forward.5} parent=1 // pred_check
      _
    $region19: #{my_model_forward.5} parent=1 // pred_check_branch
      %20 = sbr.rel (0) target = $region21
    $region20: #{my_model_forward.5} parent=1 // pred_region
      _
    $region21: #{my_model_forward.5} parent=1 // pred_fallthru
      _
    %v21 = vld [vmem:[%s0] sm:$0x3f]
    %v22 = vld [vmem:[%s1] sm:$0xf]
    %v23 = vld [vmem:[%s1 + $0x4] sm:$0xf]
    %v24 = vld [vmem:[%s1 + $0x8] sm:$0xf]
    %v25 = vld [vmem:[%s1 + $0xc] sm:$0xf]
    %v26 = vld [vmem:[%s1 + $0x10] sm:$0xf]
    %v27 = vld [vmem:[%s1 + $0x14] sm:$0xf]
    %v28 = vld [vmem:[%s1 + $0x18] sm:$0xf]
    %v29 = vld [vmem:[%s1 + $0x1c] sm:$0xf]
    %v30 = vld [vmem:[%s1 + $0x20] sm:$0xf]
    %v31 = vld [vmem:[%s1 + $0x24] sm:$0xf]
    %v32 = vld [vmem:[%s1 + $0x28] sm:$0xf]
    %v33 = vld [vmem:[%s1 + $0x2c] sm:$0xf]
    %v34 = vld [vmem:[%s1 + $0x30] sm:$0xf]
    %v35 = vld [vmem:[%s1 + $0x34] sm:$0xf]
    %v36 = vld [vmem:[%s1 + $0x38] sm:$0xf]
    %v37 = vld [vmem:[%s1 + $0x3c] sm:$0xf]
    %v38 = vld [vmem:[%s1 + $0x40] sm:$0xf]
    %v39 = vld [vmem:[%s1 + $0x44] sm:$0xf]
    %v40 = vld [vmem:[%s1 + $0x48] sm:$0xf]
    %v41 = vld [vmem:[%s1 + $0x4c] sm:$0xf]
    %v42 = vld [vmem:[%s1 + $0x50] sm:$0xf]
    %v43 = vld [vmem:[%s1 + $0x54] sm:$0xf]
    %v44 = vld [vmem:[%s1 + $0x58] sm:$0xf]
    %v45 = vld [vmem:[%s1 + $0x5c] sm:$0xf]
    %v46 = vld [vmem:[%s1 + $0x60] sm:$0xf]
    %v47 = vld [vmem:[%s1 + $0x64] sm:$0xf]
    %v48 = vld [vmem:[%s1 + $0x68] sm:$0xf]
    %v49 = vld [vmem:[%s1 + $0x6c] sm:$0xf]
    %v50 = vld [vmem:[%s1 + $0x70] sm:$0xf]
    %v51 = vld [vmem:[%s1 + $0x74] sm:$0xf]
    %v52 = vld [vmem:[%s1 + $0x78] sm:$0xf]
    %v53 = vld [vmem:[%s1 + $0x7c] sm:$0xf]
    %v54 = vld [vmem:[%s1 + $0x80] sm:$0xf]
    %v55 = vld [vmem:[%s1 + $0x84] sm:$0xf]
    %v56 = vld [vmem:[%s1 + $0x88] sm:$0xf]
    %v57 = vld [vmem:[%s1 + $0x8c] sm:$0xf]
    %v58 = vld [vmem:[%s1 + $0x90] sm:$0xf]
    %v59 = vld [vmem:[%s1 + $0x94] sm:$0xf]
    %v60 = vld [vmem:[%s1 + $0x98] sm:$0xf]
    %v61 = vld [vmem:[%s1 + $0x9c] sm:$0xf]
    %v62 = vunpack.c.l.bf16 %v22
    %v63 = vunpack.c.l.bf16 %v23
    %v64 = vunpack.c.l.bf16 %v24
    %v65 = vunpack.c.l.bf16 %v25
    %v66 = vunpack.c.l.bf16 %v26
    %v67 = vunpack.c.l.bf16 %v27
    %v68 = vunpack.c.l.bf16 %v28
    %v69 = vunpack.c.l.bf16 %v29
    %v70 = vunpack.c.l.bf16 %v30
    %v71 = vunpack.c.l.bf16 %v31
    %v72 = vunpack.c.l.bf16 %v32
    %v73 = vunpack.c.l.bf16 %v33
    %v74 = vunpack.c.l.bf16 %v34
    %v75 = vunpack.c.l.bf16 %v35
    %v76 = vunpack.c.l.bf16 %v36
    %v77 = vunpack.c.l.bf16 %v37
    %v78 = vunpack.c.l.bf16 %v38
    %v79 = vunpack.c.l.bf16 %v39
    %v80 = vunpack.c.l.bf16 %v40
    %v81 = vunpack.c.l.bf16 %v41
    %v82 = vunpack.c.l.bf16 %v42
    %v83 = vunpack.c.l.bf16 %v43
    %v84 = vunpack.c.l.bf16 %v44
    %v85 = vunpack.c.l.bf16 %v45
    %v86 = vunpack.c.l.bf16 %v46
    %v87 = vunpack.c.l.bf16 %v47
    %v88 = vunpack.c.l.bf16 %v48
    %v89 = vunpack.c.l.bf16 %v49
    %v90 = vunpack.c.l.bf16 %v50
    %v91 = vunpack.c.l.bf16 %v51
    %v92 = vunpack.c.l.bf16 %v52
    %v93 = vunpack.c.l.bf16 %v53
    %v94 = vunpack.c.l.bf16 %v54
    %v95 = vunpack.c.l.bf16 %v55
    %v96 = vunpack.c.l.bf16 %v56
    %v97 = vunpack.c.l.bf16 %v57
    %v98 = vunpack.c.l.bf16 %v58
    %v99 = vunpack.c.l.bf16 %v59
    %v100 = vunpack.c.l.bf16 %v60
    %v101 = vunpack.c.l.bf16 %v61
    %v102 = vld [vmem:[%s3] sm:$0xf]
    %v103 = vld [vmem:[%s3 + $0x4] sm:$0xf]
    %v104 = vld [vmem:[%s3 + $0x8] sm:$0xf]
    %v105 = vld [vmem:[%s3 + $0xc] sm:$0xf]
    %v106 = vld [vmem:[%s3 + $0x10] sm:$0xf]
    %v107 = vld [vmem:[%s3 + $0x14] sm:$0xf]
    %v108 = vld [vmem:[%s3 + $0x18] sm:$0x1]
    %v109 = vunpack.c.l.bf16 %v102
    %v110 = vunpack.c.l.bf16 %v103
    %v111 = vunpack.c.l.bf16 %v104
    %v112 = vunpack.c.l.bf16 %v105
    %v113 = vunpack.c.l.bf16 %v106
    %v114 = vunpack.c.l.bf16 %v107
    %v115 = vunpack.c.l.bf16 %v108
    %v116 = vld [vmem:[%s2] sm:$0x1]
    %v118 = vperm.slane %v116, 0
    %121 = vst [vmem:[#allocation1] ss:$4 sm:$0xff] %v21
    %v122 = vld.sshfl [vmem:[#allocation1] sm:$0xff pattern:$0x73625140]
    %v123 = vld.sshfl [vmem:[#allocation1 + $0x8] sm:$0xff pattern:$0x73625140]
    %v124 = vld.sshfl [vmem:[#allocation1 + $0x10] sm:$0xff pattern:$0x73625140]
    %vm127 = vcmask 523264
    %v128 = vsel %vm127, %v124, 0
    %130 = vmatpush.msra.mxu0 %v77
    %131 = vmatpush.msra.mxu0 %v76
    %132 = vmatpush.msra.mxu0 %v75
    %133 = vmatpush.msra.mxu0 %v74
    %134 = vmatpush.msra.mxu0 %v73
    %135 = vmatpush.msra.mxu0 %v72
    %136 = vmatpush.msra.mxu0 %v71
    %137 = vmatpush.msra.mxu0 %v70
    %138 = vmatpush.msra.mxu0 %v69
    %139 = vmatpush.msra.mxu0 %v68
    %140 = vmatpush.msra.mxu0 %v67
    %141 = vmatpush.msra.mxu0 %v66
    %142 = vmatpush.msra.mxu0 %v65
    %143 = vmatpush.msra.mxu0 %v64
    %144 = vmatpush.msra.mxu0 %v63
    %145 = vmatpush.msra.mxu0 %v62
    %146 = vmatmul.f32.gmra.mxu0 %v122
    %v147 = vpop.f32.mrf.mxu0
    %v148 = vadd.f32 %v118, %v147
    %149 = vdwg.mxu0
    %150 = vmatpush.msra.mxu0 %v93
    %151 = vmatpush.msra.mxu0 %v92
    %152 = vmatpush.msra.mxu0 %v91
    %153 = vmatpush.msra.mxu0 %v90
    %154 = vmatpush.msra.mxu0 %v89
    %155 = vmatpush.msra.mxu0 %v88
    %156 = vmatpush.msra.mxu0 %v87
    %157 = vmatpush.msra.mxu0 %v86
    %158 = vmatpush.msra.mxu0 %v85
    %159 = vmatpush.msra.mxu0 %v84
    %160 = vmatpush.msra.mxu0 %v83
    %161 = vmatpush.msra.mxu0 %v82
    %162 = vmatpush.msra.mxu0 %v81
    %163 = vmatpush.msra.mxu0 %v80
    %164 = vmatpush.msra.mxu0 %v79
    %165 = vmatpush.msra.mxu0 %v78
    %166 = vmatmul.f32.gmra.mxu0 %v123
    %v167 = vpop.f32.mrf.mxu0
    %v168 = vadd.f32 %v148, %v167
    %169 = vdwg.mxu0
    %170 = vmatpush.msra.mxu0 0.0
    %171 = vmatpush.msra.mxu0 0.0
    %172 = vmatpush.msra.mxu0 0.0
    %173 = vmatpush.msra.mxu0 0.0
    %174 = vmatpush.msra.mxu0 0.0
    %175 = vmatpush.msra.mxu0 0.0
    %176 = vmatpush.msra.mxu0 0.0
    %177 = vmatpush.msra.mxu0 0.0
    %178 = vmatpush.msra.mxu0 %v101
    %179 = vmatpush.msra.mxu0 %v100
    %180 = vmatpush.msra.mxu0 %v99
    %181 = vmatpush.msra.mxu0 %v98
    %182 = vmatpush.msra.mxu0 %v97
    %183 = vmatpush.msra.mxu0 %v96
    %184 = vmatpush.msra.mxu0 %v95
    %185 = vmatpush.msra.mxu0 %v94
    %186 = vmatmul.f32.gmra.mxu0 %v128
    %v187 = vpop.f32.mrf.mxu0
    %v188 = vadd.f32 %v168, %v187
    %189 = vdwg.mxu0
    %v190 = vmax.f32 %v188, 0.0
    %v191 = vld [vmem:[%s4] sm:$0x1]
    %v193 = vperm.slane %v191, 0
    %vm195 = vcmask 408576
    %v197 = vsel %vm195, %v190, 0
    %vm199 = vcmask 1041408
    %v201 = vsel %vm199, %v115, 0
    %203 = vmatpush.msra.mxu0 0.0
    %204 = vmatpush.msra.mxu0 0.0
    %205 = vmatpush.msra.mxu0 0.0
    %206 = vmatpush.msra.mxu0 0.0
    %207 = vmatpush.msra.mxu0 0.0
    %208 = vmatpush.msra.mxu0 0.0
    %209 = vmatpush.msra.mxu0 0.0
    %210 = vmatpush.msra.mxu0 0.0
    %211 = vmatpush.msra.mxu0 0.0
    %212 = vmatpush.msra.mxu0 %v201
    %213 = vmatpush.msra.mxu0 %v114
    %214 = vmatpush.msra.mxu0 %v113
    %215 = vmatpush.msra.mxu0 %v112
    %216 = vmatpush.msra.mxu0 %v111
    %217 = vmatpush.msra.mxu0 %v110
    %218 = vmatpush.msra.mxu0 %v109
    %219 = vmatmul.f32.gmra.mxu0 %v197
    %v220 = vpop.f32.mrf.mxu0
    %v221 = vadd.f32 %v193, %v220
    %222 = vdwg.mxu0
    %vm223 = vcmask 74752
    %v224 = vsel %vm223, %v221, -inf
    %225 = vmax.xlane.f32.xlu0 %v224
    %v226 = vpop.xlane.xlu0 %225
    %v227 = vsub.f32 %v221, %v226
    %v228 = vmul.f32 %v227, 1.442695
    %v229 = vpow.pop %v228
    %v230 = vsel %vm223, %v229, 0.0
    %231 = vadd.xlane.f32.xlu0 %v230
    %v232 = vpop.xlane.xlu0 %231
    %v233 = vlog2.pop %v232
    %v234 = vmul.f32 %v233, 0.6931472
    %v235 = vadd.f32 %v234, %v226
    %v236 = vsub.f32 %v221, %v235
    %237 = vst.msk [vmem:[#allocation2] sm:$0x3] %vm223, %v236
    // Predicated region
    $region22: #{my_model_forward.5} parent=1 // pred_check
      _
    $region23: #{my_model_forward.5} parent=1 // pred_check_branch
      %239 = sbr.rel (0) target = $region25
    $region24: #{my_model_forward.5} parent=1 // pred_region
      %241 = vsyncadd [#allocation3], 0
      %s243 = sshll.u32 [#allocation2], 4
      %s244 = int_to_ptr.vmem [resolvable:$true] %s243
      %s245 = sshll.u32 %s5, 4
      %s246 = int_to_ptr.hbm [resolvable:$true] %s245
      %248 = dma.vmem_to_hbm [thread:$0]  %s244, 32, %s246, [#allocation3]
    $region25: #{my_model_forward.5} parent=1 // pred_fallthru
      _
    // Predicated region
    $region26: #{my_model_forward.5} parent=1 // pred_check
      _
    $region27: #{my_model_forward.5} parent=1 // pred_check_branch
      %250 = sbr.rel (0) target = $region29
    $region28: #{my_model_forward.5} parent=1 // pred_region
      %252 = dma.done [#allocation3], 32
    $region29: #{my_model_forward.5} parent=1 // pred_fallthru
      _
    %253 = vsyncpa [#allocation3], 1

</llo_original>
